<compile_context>
chip_gen: v7x
topology: tpu7x:2x2x1
jax: 0.10.0
libtpu: 0.0.40
codegen_flags: <defaults>
</compile_context>

<pallas_src>
import functools
import math

import jax
import jax.numpy as jnp
from jax import lax
from jax.experimental import pallas as pl
from jax.experimental.pallas import tpu as pltpu


def _round_up(x, m):
    return (x + m - 1) // m * m


def _fused_mha_kernel(x_ref, wqkv_ref, wo_ref, bo_ref, o_ref, *,
                      num_heads, head_dim, mxu_dtype):
    """Fused multi-head causal attention + output projection for one batch block.

    x_ref    : (bb, Tp, Din_p)  padded input rows (mxu_dtype)
    wqkv_ref : (Din_p, QKVp)    packed [Wq*scale | Wk | Wv] columns (mxu_dtype)
    wo_ref   : (D, Dp)          output projection weight (mxu_dtype)
    bo_ref   : (1, Dp)          output projection bias (f32)
    o_ref    : (bb, Tp, Dp)     lane-dense output block (f32)
    """
    H, hd = num_heads, head_dim
    bb, Tp, Din_p = x_ref.shape

    # ---- fused Q/K/V projection: ONE lane-dense matmul, M = bb*Tp rows ------
    x2 = x_ref[...].reshape(bb * Tp, Din_p)                   # free leading merge
    qkv = jnp.dot(x2, wqkv_ref[...],
                  preferred_element_type=jnp.float32)         # (bb*Tp, QKVp) f32
    qkv_m = qkv.astype(mxu_dtype).reshape(bb, Tp, qkv.shape[-1])   # cast ONCE

    # Causal mask, shared across heads / batch (padded key cols have col > row
    # for every real row, so zero-padding is inert).
    row = lax.broadcasted_iota(jnp.int32, (Tp, Tp), 0)
    col = lax.broadcasted_iota(jnp.int32, (Tp, Tp), 1)
    causal = (col > row)[None]                                # (1, Tp, Tp)

    # ---- per-head causal attention, batched over bb (heads unrolled) --------
    z_heads = []
    for h in range(H):
        q_h = qkv_m[:, :, h * hd:(h + 1) * hd]                # (bb, Tp, hd); scale pre-folded
        k_h = qkv_m[:, :, (H + h) * hd:(H + h + 1) * hd]
        v_h = qkv_m[:, :, (2 * H + h) * hd:(2 * H + h + 1) * hd]

        s = jnp.einsum("btk,bsk->bts", q_h, k_h,
                       preferred_element_type=jnp.float32)    # (bb, Tp, Tp) f32
        s = jnp.where(causal, -jnp.inf, s)

        # Numerically stable softmax in f32; reciprocal goes to the EUP slot.
        m = jnp.max(s, axis=-1, keepdims=True)
        p = jnp.exp(s - m)
        denom = jnp.sum(p, axis=-1, keepdims=True)
        w = p * pl.reciprocal(denom, approx=True)

        z_heads.append(jnp.einsum("bts,bsk->btk", w.astype(mxu_dtype), v_h,
                                  preferred_element_type=jnp.float32))

    # ---- head concat + output projection: ONE matmul with K = H*hd ----------
    z = jnp.concatenate(z_heads, axis=-1)                     # (bb, Tp, D) f32
    z2 = z.reshape(bb * Tp, H * hd).astype(mxu_dtype)         # cast ONCE
    out = jnp.dot(z2, wo_ref[...],
                  preferred_element_type=jnp.float32) + bo_ref[...]
    o_ref[...] = out.reshape(bb, Tp, out.shape[-1]).astype(o_ref.dtype)


def mia_multi_head_attention(x, params, *, mxu_dtype=jnp.float32,
                             batch_block=None):
    """Forward pass equivalent to MiaMultiHeadAttention.forward (eval mode).

    params:
      wq, wk, wv : (H, Din, hd)  per-head projection weights (x @ W convention)
      wo         : (D, D)        output projection weight (x @ W convention)
      bo         : (1, D)        output projection bias
    """
    B, T, Din = x.shape
    wq, wk, wv = params["wq"], params["wk"], params["wv"]
    wo, bo = params["wo"], params["bo"]
    H, _, hd = wq.shape
    D = H * hd
    scale = 1.0 / math.sqrt(hd)

    # Pad to full (8, 128) sublane/lane occupancy -> unmasked vld/vst.
    LANE, SUB = 128, 8
    Tp = _round_up(T, SUB)
    Din_p = _round_up(Din, LANE)
    Dp = _round_up(D, LANE)
    QKVp = _round_up(3 * H * hd, LANE)

    # Batch block: fold the whole batch into one grid step at tiny B (maximizes
    # matmul M and amortizes the ~0.35us/step overhead).  Set batch_block=B//2
    # on v7x to keep both TensorCores busy at larger B.
    bb = B if batch_block is None else max(1, min(batch_block, B))
    Bp = _round_up(B, bb)

    # ---- wrapper-side packing (lane-dense, one-time / XLA-fused) ------------
    x_p = jnp.pad(x, ((0, Bp - B), (0, Tp - T), (0, Din_p - Din))).astype(mxu_dtype)

    def _cols(w):                                   # (H, Din, hd) -> (Din, H*hd)
        return jnp.transpose(w, (1, 0, 2)).reshape(Din, H * hd)

    wqkv = jnp.concatenate([_cols(wq) * scale, _cols(wk), _cols(wv)], axis=1)
    wqkv_p = jnp.pad(wqkv, ((0, Din_p - Din),
                            (0, QKVp - 3 * H * hd))).astype(mxu_dtype)
    wo_p = jnp.pad(wo, ((0, 0), (0, Dp - D))).astype(mxu_dtype)      # (D, Dp)
    bo_p = jnp.pad(bo, ((0, 0), (0, Dp - D))).astype(jnp.float32)    # (1, Dp)

    kernel = functools.partial(_fused_mha_kernel, num_heads=H, head_dim=hd,
                               mxu_dtype=mxu_dtype)

    out = pl.pallas_call(
        kernel,
        out_shape=jax.ShapeDtypeStruct((Bp, Tp, Dp), jnp.float32),
        grid=(Bp // bb,),
        in_specs=[
            pl.BlockSpec((bb, Tp, Din_p), lambda b: (b, 0, 0)),
            pl.BlockSpec((Din_p, QKVp), lambda b: (0, 0)),
            pl.BlockSpec((D, Dp), lambda b: (0, 0)),
            pl.BlockSpec((1, Dp), lambda b: (0, 0)),
        ],
        out_specs=pl.BlockSpec((bb, Tp, Dp), lambda b: (b, 0, 0)),
        compiler_params=pltpu.CompilerParams(
            dimension_semantics=("parallel",)),
    )(x_p, wqkv_p, wo_p, bo_p)

    return out[:B, :T, :D]


def _reference(x, params):
    """Pure-JAX reference mirroring the PyTorch forward (eval mode)."""
    wq, wk, wv = params["wq"], params["wk"], params["wv"]
    H, Din, hd = wq.shape
    B, T, _ = x.shape
    mask = jnp.triu(jnp.ones((T, T), dtype=bool), k=1)
    heads = []
    for h in range(H):
        q = x @ wq[h]
        k = x @ wk[h]
        v = x @ wv[h]
        att = q @ jnp.swapaxes(k, 1, 2)
        att = jnp.where(mask[None], -jnp.inf, att)
        w = jax.nn.softmax(att / math.sqrt(hd), axis=-1)
        heads.append(w @ v)
    z = jnp.concatenate(heads, axis=-1)
    return z @ params["wo"] + params["bo"][0]


if __name__ == "__main__":
    # Small shapes implied by the module: input_dim=32, output_dim=32,
    # total_heads=4 (head_dim=8), context_length=8, batch=2, dropout_rate=0.
    B, T, Din = 2, 8, 32
    H, hd = 4, 8
    D = H * hd

    key = jax.random.PRNGKey(0)
    kq, kk, kv, kw, kb, kx = jax.random.split(key, 6)
    params = {
        "wq": 0.1 * jax.random.normal(kq, (H, Din, hd), jnp.float32),
        "wk": 0.1 * jax.random.normal(kk, (H, Din, hd), jnp.float32),
        "wv": 0.1 * jax.random.normal(kv, (H, Din, hd), jnp.float32),
        "wo": 0.1 * jax.random.normal(kw, (D, D), jnp.float32),
        "bo": 0.1 * jax.random.normal(kb, (1, D), jnp.float32),
    }
    x = jax.random.normal(kx, (B, T, Din), jnp.float32)

    fwd = jax.jit(mia_multi_head_attention,
                  static_argnames=("mxu_dtype", "batch_block"))
    ref = _reference(x, params)

    # f32 MXU path (v5e default). Tolerance covers the EUP approx reciprocal.
    out = jax.block_until_ready(fwd(x, params))
    assert out.shape == (B, T, D)
    assert jnp.allclose(out, ref, atol=2e-3, rtol=2e-3), "f32 mismatch vs reference"

    # bf16 MXU-input path (v6e/v7x): f32 accumulation + f32 softmax, looser tol.
    out_bf16 = jax.block_until_ready(fwd(x, params, mxu_dtype=jnp.bfloat16))
    assert out_bf16.shape == (B, T, D)
    assert jnp.allclose(out_bf16, ref, atol=6e-2, rtol=6e-2), "bf16 mismatch vs reference"

    print("KERNEL_OK")
</pallas_src>

<mosaic_0001>
module attributes {stable_mosaic.version = 11 : i64} {
  func.func @_fused_mha_kernel(%arg0: i32, %arg1: memref<2x8x128xf32, #tpu.memory_space<vmem>>, %arg2: memref<128x128xf32, #tpu.memory_space<vmem>>, %arg3: memref<32x128xf32, #tpu.memory_space<vmem>>, %arg4: memref<1x128xf32, #tpu.memory_space<vmem>>, %arg5: memref<2x8x128xf32, #tpu.memory_space<vmem>>) attributes {dimension_semantics = [#tpu.dimension_semantics<parallel>], iteration_bounds = array<i64: 1>, scalar_prefetch = 0 : i64, scratch_operands = 0 : i64, tpu.core_type = #tpu.core_type<tc>, window_params = [{transform_indices = @transform_0, window_bounds = array<i64: 2, 8, 128>}, {pipeline_mode = #tpu.pipeline_mode<synchronous>, transform_indices = @transform_1, window_bounds = array<i64: 128, 128>}, {pipeline_mode = #tpu.pipeline_mode<synchronous>, transform_indices = @transform_2, window_bounds = array<i64: 32, 128>}, {pipeline_mode = #tpu.pipeline_mode<synchronous>, transform_indices = @transform_3, window_bounds = array<i64: 1, 128>}, {transform_indices = @transform_4, window_bounds = array<i64: 2, 8, 128>}]} {
    %c0 = arith.constant 0 : index
    %c0_0 = arith.constant 0 : index
    %c0_1 = arith.constant 0 : index
    %0 = vector.load %arg1[%c0, %c0_0, %c0_1] : memref<2x8x128xf32, #tpu.memory_space<vmem>>, vector<2x8x128xf32>
    %1 = vector.shape_cast %0 : vector<2x8x128xf32> to vector<16x128xf32>
    %c0_2 = arith.constant 0 : index
    %c0_3 = arith.constant 0 : index
    %2 = vector.load %arg2[%c0_2, %c0_3] : memref<128x128xf32, #tpu.memory_space<vmem>>, vector<128x128xf32>
    %cst = arith.constant dense<0.000000e+00> : vector<16x128xf32>
    %3 = tpu.matmul %1, %2, %cst {dimension_numbers = #tpu.dot_dimension_numbers<[1], [0], [0], [1], [0, 0, 1, 1], [], []>} : vector<16x128xf32>, vector<128x128xf32>, vector<16x128xf32> -> vector<16x128xf32>
    %4 = vector.shape_cast %3 : vector<16x128xf32> to vector<2x8x128xf32>
    %5 = tpu.iota {dimensions = array<i32: 0>} : vector<8x8xi32>
    %6 = tpu.iota {dimensions = array<i32: 1>} : vector<8x8xi32>
    %7 = arith.cmpi sgt, %6, %5 : vector<8x8xi32>
    %8 = vector.shape_cast %7 : vector<8x8xi1> to vector<1x8x8xi1>
    %9 = vector.extract_strided_slice %4 {offsets = [0, 0, 0], sizes = [2, 8, 8], strides = [1, 1, 1]} : vector<2x8x128xf32> to vector<2x8x8xf32>
    %10 = vector.extract_strided_slice %4 {offsets = [0, 0, 32], sizes = [2, 8, 8], strides = [1, 1, 1]} : vector<2x8x128xf32> to vector<2x8x8xf32>
    %11 = vector.extract_strided_slice %4 {offsets = [0, 0, 64], sizes = [2, 8, 8], strides = [1, 1, 1]} : vector<2x8x128xf32> to vector<2x8x8xf32>
    "tpu.trace_start"() <{level = 10 : i32, message = "btk,bsk->bts"}> : () -> ()
    %cst_4 = arith.constant dense<0.000000e+00> : vector<2x8x8xf32>
    %12 = tpu.matmul %9, %10, %cst_4 {dimension_numbers = #tpu.dot_dimension_numbers<[2], [2], [1], [1], [0, 0, 0, 1, 1, 1], [0], [0]>} : vector<2x8x8xf32>, vector<2x8x8xf32>, vector<2x8x8xf32> -> vector<2x8x8xf32>
    %cst_5 = arith.constant 0xFF800000 : f32
    "tpu.trace_stop"() : () -> ()
    %13 = vector.shape_cast %8 : vector<1x8x8xi1> to vector<1x8x8xi1>
    %14 = vector.broadcast %13 : vector<1x8x8xi1> to vector<2x8x8xi1>
    %15 = vector.broadcast %cst_5 : f32 to vector<2x8x8xf32>
    %16 = arith.select %14, %15, %12 : vector<2x8x8xi1>, vector<2x8x8xf32>
    %cst_6 = arith.constant dense<0xFF800000> : vector<2x8xf32>
    %17 = vector.multi_reduction <maximumf>, %16, %cst_6 [2] : vector<2x8x8xf32> to vector<2x8xf32>
    %18 = vector.shape_cast %17 : vector<2x8xf32> to vector<2x8x1xf32>
    %19 = vector.broadcast %18 : vector<2x8x1xf32> to vector<2x8x8xf32>
    %20 = arith.subf %16, %19 : vector<2x8x8xf32>
    %21 = math.exp %20 : vector<2x8x8xf32>
    %cst_7 = arith.constant dense<0.000000e+00> : vector<2x8xf32>
    %22 = vector.multi_reduction <add>, %21, %cst_7 [2] : vector<2x8x8xf32> to vector<2x8xf32>
    %23 = vector.shape_cast %22 : vector<2x8xf32> to vector<2x8x1xf32>
    %24 = tpu.reciprocal %23 {approx = true} : vector<2x8x1xf32> -> vector<2x8x1xf32>
    %25 = vector.broadcast %24 : vector<2x8x1xf32> to vector<2x8x8xf32>
    %26 = arith.mulf %21, %25 : vector<2x8x8xf32>
    "tpu.trace_start"() <{level = 10 : i32, message = "bts,bsk->btk"}> : () -> ()
    %cst_8 = arith.constant dense<0.000000e+00> : vector<2x8x8xf32>
    %27 = tpu.matmul %26, %11, %cst_8 {dimension_numbers = #tpu.dot_dimension_numbers<[2], [1], [1], [2], [0, 0, 0, 1, 1, 2], [0], [0]>} : vector<2x8x8xf32>, vector<2x8x8xf32>, vector<2x8x8xf32> -> vector<2x8x8xf32>
    "tpu.trace_stop"() : () -> ()
    %28 = vector.extract_strided_slice %4 {offsets = [0, 0, 8], sizes = [2, 8, 8], strides = [1, 1, 1]} : vector<2x8x128xf32> to vector<2x8x8xf32>
    %29 = vector.extract_strided_slice %4 {offsets = [0, 0, 40], sizes = [2, 8, 8], strides = [1, 1, 1]} : vector<2x8x128xf32> to vector<2x8x8xf32>
    %30 = vector.extract_strided_slice %4 {offsets = [0, 0, 72], sizes = [2, 8, 8], strides = [1, 1, 1]} : vector<2x8x128xf32> to vector<2x8x8xf32>
    "tpu.trace_start"() <{level = 10 : i32, message = "btk,bsk->bts"}> : () -> ()
    %cst_9 = arith.constant dense<0.000000e+00> : vector<2x8x8xf32>
    %31 = tpu.matmul %28, %29, %cst_9 {dimension_numbers = #tpu.dot_dimension_numbers<[2], [2], [1], [1], [0, 0, 0, 1, 1, 1], [0], [0]>} : vector<2x8x8xf32>, vector<2x8x8xf32>, vector<2x8x8xf32> -> vector<2x8x8xf32>
    %cst_10 = arith.constant 0xFF800000 : f32
    "tpu.trace_stop"() : () -> ()
    %32 = vector.shape_cast %8 : vector<1x8x8xi1> to vector<1x8x8xi1>
    %33 = vector.broadcast %32 : vector<1x8x8xi1> to vector<2x8x8xi1>
    %34 = vector.broadcast %cst_10 : f32 to vector<2x8x8xf32>
    %35 = arith.select %33, %34, %31 : vector<2x8x8xi1>, vector<2x8x8xf32>
    %cst_11 = arith.constant dense<0xFF800000> : vector<2x8xf32>
    %36 = vector.multi_reduction <maximumf>, %35, %cst_11 [2] : vector<2x8x8xf32> to vector<2x8xf32>
    %37 = vector.shape_cast %36 : vector<2x8xf32> to vector<2x8x1xf32>
    %38 = vector.broadcast %37 : vector<2x8x1xf32> to vector<2x8x8xf32>
    %39 = arith.subf %35, %38 : vector<2x8x8xf32>
    %40 = math.exp %39 : vector<2x8x8xf32>
    %cst_12 = arith.constant dense<0.000000e+00> : vector<2x8xf32>
    %41 = vector.multi_reduction <add>, %40, %cst_12 [2] : vector<2x8x8xf32> to vector<2x8xf32>
    %42 = vector.shape_cast %41 : vector<2x8xf32> to vector<2x8x1xf32>
    %43 = tpu.reciprocal %42 {approx = true} : vector<2x8x1xf32> -> vector<2x8x1xf32>
    %44 = vector.broadcast %43 : vector<2x8x1xf32> to vector<2x8x8xf32>
    %45 = arith.mulf %40, %44 : vector<2x8x8xf32>
    "tpu.trace_start"() <{level = 10 : i32, message = "bts,bsk->btk"}> : () -> ()
    %cst_13 = arith.constant dense<0.000000e+00> : vector<2x8x8xf32>
    %46 = tpu.matmul %45, %30, %cst_13 {dimension_numbers = #tpu.dot_dimension_numbers<[2], [1], [1], [2], [0, 0, 0, 1, 1, 2], [0], [0]>} : vector<2x8x8xf32>, vector<2x8x8xf32>, vector<2x8x8xf32> -> vector<2x8x8xf32>
    "tpu.trace_stop"() : () -> ()
    %47 = vector.extract_strided_slice %4 {offsets = [0, 0, 16], sizes = [2, 8, 8], strides = [1, 1, 1]} : vector<2x8x128xf32> to vector<2x8x8xf32>
    %48 = vector.extract_strided_slice %4 {offsets = [0, 0, 48], sizes = [2, 8, 8], strides = [1, 1, 1]} : vector<2x8x128xf32> to vector<2x8x8xf32>
    %49 = vector.extract_strided_slice %4 {offsets = [0, 0, 80], sizes = [2, 8, 8], strides = [1, 1, 1]} : vector<2x8x128xf32> to vector<2x8x8xf32>
    "tpu.trace_start"() <{level = 10 : i32, message = "btk,bsk->bts"}> : () -> ()
    %cst_14 = arith.constant dense<0.000000e+00> : vector<2x8x8xf32>
    %50 = tpu.matmul %47, %48, %cst_14 {dimension_numbers = #tpu.dot_dimension_numbers<[2], [2], [1], [1], [0, 0, 0, 1, 1, 1], [0], [0]>} : vector<2x8x8xf32>, vector<2x8x8xf32>, vector<2x8x8xf32> -> vector<2x8x8xf32>
    %cst_15 = arith.constant 0xFF800000 : f32
    "tpu.trace_stop"() : () -> ()
    %51 = vector.shape_cast %8 : vector<1x8x8xi1> to vector<1x8x8xi1>
    %52 = vector.broadcast %51 : vector<1x8x8xi1> to vector<2x8x8xi1>
    %53 = vector.broadcast %cst_15 : f32 to vector<2x8x8xf32>
    %54 = arith.select %52, %53, %50 : vector<2x8x8xi1>, vector<2x8x8xf32>
    %cst_16 = arith.constant dense<0xFF800000> : vector<2x8xf32>
    %55 = vector.multi_reduction <maximumf>, %54, %cst_16 [2] : vector<2x8x8xf32> to vector<2x8xf32>
    %56 = vector.shape_cast %55 : vector<2x8xf32> to vector<2x8x1xf32>
    %57 = vector.broadcast %56 : vector<2x8x1xf32> to vector<2x8x8xf32>
    %58 = arith.subf %54, %57 : vector<2x8x8xf32>
    %59 = math.exp %58 : vector<2x8x8xf32>
    %cst_17 = arith.constant dense<0.000000e+00> : vector<2x8xf32>
    %60 = vector.multi_reduction <add>, %59, %cst_17 [2] : vector<2x8x8xf32> to vector<2x8xf32>
    %61 = vector.shape_cast %60 : vector<2x8xf32> to vector<2x8x1xf32>
    %62 = tpu.reciprocal %61 {approx = true} : vector<2x8x1xf32> -> vector<2x8x1xf32>
    %63 = vector.broadcast %62 : vector<2x8x1xf32> to vector<2x8x8xf32>
    %64 = arith.mulf %59, %63 : vector<2x8x8xf32>
    "tpu.trace_start"() <{level = 10 : i32, message = "bts,bsk->btk"}> : () -> ()
    %cst_18 = arith.constant dense<0.000000e+00> : vector<2x8x8xf32>
    %65 = tpu.matmul %64, %49, %cst_18 {dimension_numbers = #tpu.dot_dimension_numbers<[2], [1], [1], [2], [0, 0, 0, 1, 1, 2], [0], [0]>} : vector<2x8x8xf32>, vector<2x8x8xf32>, vector<2x8x8xf32> -> vector<2x8x8xf32>
    "tpu.trace_stop"() : () -> ()
    %66 = vector.extract_strided_slice %4 {offsets = [0, 0, 24], sizes = [2, 8, 8], strides = [1, 1, 1]} : vector<2x8x128xf32> to vector<2x8x8xf32>
    %67 = vector.extract_strided_slice %4 {offsets = [0, 0, 56], sizes = [2, 8, 8], strides = [1, 1, 1]} : vector<2x8x128xf32> to vector<2x8x8xf32>
    %68 = vector.extract_strided_slice %4 {offsets = [0, 0, 88], sizes = [2, 8, 8], strides = [1, 1, 1]} : vector<2x8x128xf32> to vector<2x8x8xf32>
    "tpu.trace_start"() <{level = 10 : i32, message = "btk,bsk->bts"}> : () -> ()
    %cst_19 = arith.constant dense<0.000000e+00> : vector<2x8x8xf32>
    %69 = tpu.matmul %66, %67, %cst_19 {dimension_numbers = #tpu.dot_dimension_numbers<[2], [2], [1], [1], [0, 0, 0, 1, 1, 1], [0], [0]>} : vector<2x8x8xf32>, vector<2x8x8xf32>, vector<2x8x8xf32> -> vector<2x8x8xf32>
    %cst_20 = arith.constant 0xFF800000 : f32
    "tpu.trace_stop"() : () -> ()
    %70 = vector.shape_cast %8 : vector<1x8x8xi1> to vector<1x8x8xi1>
    %71 = vector.broadcast %70 : vector<1x8x8xi1> to vector<2x8x8xi1>
    %72 = vector.broadcast %cst_20 : f32 to vector<2x8x8xf32>
    %73 = arith.select %71, %72, %69 : vector<2x8x8xi1>, vector<2x8x8xf32>
    %cst_21 = arith.constant dense<0xFF800000> : vector<2x8xf32>
    %74 = vector.multi_reduction <maximumf>, %73, %cst_21 [2] : vector<2x8x8xf32> to vector<2x8xf32>
    %75 = vector.shape_cast %74 : vector<2x8xf32> to vector<2x8x1xf32>
    %76 = vector.broadcast %75 : vector<2x8x1xf32> to vector<2x8x8xf32>
    %77 = arith.subf %73, %76 : vector<2x8x8xf32>
    %78 = math.exp %77 : vector<2x8x8xf32>
    %cst_22 = arith.constant dense<0.000000e+00> : vector<2x8xf32>
    %79 = vector.multi_reduction <add>, %78, %cst_22 [2] : vector<2x8x8xf32> to vector<2x8xf32>
    %80 = vector.shape_cast %79 : vector<2x8xf32> to vector<2x8x1xf32>
    %81 = tpu.reciprocal %80 {approx = true} : vector<2x8x1xf32> -> vector<2x8x1xf32>
    %82 = vector.broadcast %81 : vector<2x8x1xf32> to vector<2x8x8xf32>
    %83 = arith.mulf %78, %82 : vector<2x8x8xf32>
    "tpu.trace_start"() <{level = 10 : i32, message = "bts,bsk->btk"}> : () -> ()
    %cst_23 = arith.constant dense<0.000000e+00> : vector<2x8x8xf32>
    %84 = tpu.matmul %83, %68, %cst_23 {dimension_numbers = #tpu.dot_dimension_numbers<[2], [1], [1], [2], [0, 0, 0, 1, 1, 2], [0], [0]>} : vector<2x8x8xf32>, vector<2x8x8xf32>, vector<2x8x8xf32> -> vector<2x8x8xf32>
    "tpu.trace_stop"() : () -> ()
    %85 = tpu.concatenate %27, %46, %65, %84 in 2 : vector<2x8x8xf32>, vector<2x8x8xf32>, vector<2x8x8xf32>, vector<2x8x8xf32> -> vector<2x8x32xf32>
    %86 = vector.shape_cast %85 : vector<2x8x32xf32> to vector<16x32xf32>
    %c0_24 = arith.constant 0 : index
    %c0_25 = arith.constant 0 : index
    %87 = vector.load %arg3[%c0_24, %c0_25] : memref<32x128xf32, #tpu.memory_space<vmem>>, vector<32x128xf32>
    %cst_26 = arith.constant dense<0.000000e+00> : vector<16x128xf32>
    %88 = tpu.matmul %86, %87, %cst_26 {dimension_numbers = #tpu.dot_dimension_numbers<[1], [0], [0], [1], [0, 0, 1, 1], [], []>} : vector<16x32xf32>, vector<32x128xf32>, vector<16x128xf32> -> vector<16x128xf32>
    %c0_27 = arith.constant 0 : index
    %c0_28 = arith.constant 0 : index
    %89 = vector.load %arg4[%c0_27, %c0_28] : memref<1x128xf32, #tpu.memory_space<vmem>>, vector<1x128xf32>
    %90 = vector.broadcast %89 : vector<1x128xf32> to vector<16x128xf32>
    %91 = arith.addf %88, %90 : vector<16x128xf32>
    %92 = vector.shape_cast %91 : vector<16x128xf32> to vector<2x8x128xf32>
    %c0_29 = arith.constant 0 : index
    %c0_30 = arith.constant 0 : index
    %c0_31 = arith.constant 0 : index
    %93 = vector.load %arg5[%c0_29, %c0_30, %c0_31] : memref<2x8x128xf32, #tpu.memory_space<vmem>>, vector<2x8x128xf32>
    tpu.vector_store %arg5[%c0_29, %c0_30, %c0_31], %92 {strides = array<i32>} : memref<2x8x128xf32, #tpu.memory_space<vmem>>, vector<2x8x128xf32>,
    return
  }
  func.func @transform_0(%arg0: i32) -> (i32, i32, i32) {
    %c0_i32 = arith.constant 0 : i32
    %c0_i32_0 = arith.constant 0 : i32
    %c0_i32_1 = arith.constant 0 : i32
    return %arg0, %c0_i32, %c0_i32_0 : i32, i32, i32
  }
  func.func @transform_1(%arg0: i32) -> (i32, i32) {
    %c0_i32 = arith.constant 0 : i32
    %c0_i32_0 = arith.constant 0 : i32
    %c0_i32_1 = arith.constant 0 : i32
    return %c0_i32, %c0_i32_0 : i32, i32
  }
  func.func @transform_2(%arg0: i32) -> (i32, i32) {
    %c0_i32 = arith.constant 0 : i32
    %c0_i32_0 = arith.constant 0 : i32
    %c0_i32_1 = arith.constant 0 : i32
    return %c0_i32, %c0_i32_0 : i32, i32
  }
  func.func @transform_3(%arg0: i32) -> (i32, i32) {
    %c0_i32 = arith.constant 0 : i32
    %c0_i32_0 = arith.constant 0 : i32
    %c0_i32_1 = arith.constant 0 : i32
    return %c0_i32, %c0_i32_0 : i32, i32
  }
  func.func @transform_4(%arg0: i32) -> (i32, i32, i32) {
    %c0_i32 = arith.constant 0 : i32
    %c0_i32_0 = arith.constant 0 : i32
    %c0_i32_1 = arith.constant 0 : i32
    return %arg0, %c0_i32, %c0_i32_0 : i32, i32, i32
  }
}

</mosaic_0001>

<llo_original>
// kernel: mia_multi_head_attention.1
$region0: #{mia_multi_head_attention.1}
  #allocation0 [shape = 'u32[]', space=smem, size = 0x4, offset = 0x4, fixed_abs, tag = 'smem constant byte address 0x4 - core index']
  #allocation1 [shape = 'u32[144,128]{1,0:T(1,128)}', space=vmem, size = 0x12000, scoped, tag = 'internal scratch']
  %s0 = inlined_call_operand.vmem [shape: f32[2,8,128], index: 0, kind: input, shape index: {}]
  %s1 = inlined_call_operand.vmem [shape: f32[128,128], index: 1, kind: input, shape index: {}]
  %s2 = inlined_call_operand.vmem [shape: f32[32,128], index: 2, kind: input, shape index: {}]
  %s3 = inlined_call_operand.vmem [shape: f32[1,128], index: 3, kind: input, shape index: {}]
  %s4 = inlined_call_operand.hbm [shape: f32[2,8,128], index: 4, kind: output, shape index: {}]
  %s5 = sld [smem:[#allocation0]]
  $region26: #{mia_multi_head_attention.1} parent=0
    _
  %s7 = ssub.s32 1, %s5
  %s8 = scalar_select 0, %s7, %s5
  $region1: #{mia_multi_head_attention.1} parent=0
    #allocation2 [shape = 'u8[8192]{0}', space=vmem, size = 0x2000, scoped, tag = 'output window, operand 0, single buffered']
    #allocation3 [shape = 's32[1]{0}', space=sflag, size = 0x4, scoped, tag = 'scoped memory for mia_multi_head_attention.1']
    %9 = vsyncpa [#allocation3], 0
    // Predicated region
    $region2: #{mia_multi_head_attention.1} parent=1 // pred_check
      _
    $region3: #{mia_multi_head_attention.1} parent=1 // pred_check_branch
      %11 = sbr.rel (0) target = $region5
    $region4: #{mia_multi_head_attention.1} parent=1 // pred_region
      _
    $region5: #{mia_multi_head_attention.1} parent=1 // pred_fallthru
      _
    // Predicated region
    $region6: #{mia_multi_head_attention.1} parent=1 // pred_check
      _
    $region7: #{mia_multi_head_attention.1} parent=1 // pred_check_branch
      %13 = sbr.rel (0) target = $region9
    $region8: #{mia_multi_head_attention.1} parent=1 // pred_region
      _
    $region9: #{mia_multi_head_attention.1} parent=1 // pred_fallthru
      _
    // Predicated region
    $region10: #{mia_multi_head_attention.1} parent=1 // pred_check
      _
    $region11: #{mia_multi_head_attention.1} parent=1 // pred_check_branch
      %15 = sbr.rel (0) target = $region13
    $region12: #{mia_multi_head_attention.1} parent=1 // pred_region
      _
    $region13: #{mia_multi_head_attention.1} parent=1 // pred_fallthru
      _
    // Predicated region
    $region14: #{mia_multi_head_attention.1} parent=1 // pred_check
      _
    $region15: #{mia_multi_head_attention.1} parent=1 // pred_check_branch
      %17 = sbr.rel (0) target = $region17
    $region16: #{mia_multi_head_attention.1} parent=1 // pred_region
      _
    $region17: #{mia_multi_head_attention.1} parent=1 // pred_fallthru
      _
    %v18 = vld [vmem:[%s0] sm:$0xff]
    %v19 = vld [vmem:[%s0 + $0x8] sm:$0xff]
    %v20 = vld [vmem:[%s1] sm:$0xff]
    %v21 = vld [vmem:[%s1 + $0x8] sm:$0xff]
    %v22 = vld [vmem:[%s1 + $0x10] sm:$0xff]
    %v23 = vld [vmem:[%s1 + $0x18] sm:$0xff]
    %v24 = vld [vmem:[%s1 + $0x20] sm:$0xff]
    %v25 = vld [vmem:[%s1 + $0x28] sm:$0xff]
    %v26 = vld [vmem:[%s1 + $0x30] sm:$0xff]
    %v27 = vld [vmem:[%s1 + $0x38] sm:$0xff]
    %v28 = vld [vmem:[%s1 + $0x40] sm:$0xff]
    %v29 = vld [vmem:[%s1 + $0x48] sm:$0xff]
    %v30 = vld [vmem:[%s1 + $0x50] sm:$0xff]
    %v31 = vld [vmem:[%s1 + $0x58] sm:$0xff]
    %v32 = vld [vmem:[%s1 + $0x60] sm:$0xff]
    %v33 = vld [vmem:[%s1 + $0x68] sm:$0xff]
    %v34 = vld [vmem:[%s1 + $0x70] sm:$0xff]
    %v35 = vld [vmem:[%s1 + $0x78] sm:$0xff]
    %36 = vmatprep.subr.mxu0 0.0
    %37 = vmatpush1.msra.mxu0 %v20
    %38 = vmatprep.subr.mxu0 0.0
    %39 = vmatpush1.msra.mxu0 %v21
    %40 = vmatprep.subr.mxu0 0.0
    %41 = vmatpush1.msra.mxu0 %v22
    %42 = vmatprep.subr.mxu0 0.0
    %43 = vmatpush1.msra.mxu0 %v23
    %44 = vmatprep.subr.mxu0 0.0
    %45 = vmatpush1.msra.mxu0 %v24
    %46 = vmatprep.subr.mxu0 0.0
    %47 = vmatpush1.msra.mxu0 %v25
    %48 = vmatprep.subr.mxu0 0.0
    %49 = vmatpush1.msra.mxu0 %v26
    %50 = vmatprep.subr.mxu0 0.0
    %51 = vmatpush1.msra.mxu0 %v27
    %52 = vmatprep.subr.mxu0 0.0
    %53 = vmatpush1.msra.mxu0 %v28
    %54 = vmatprep.subr.mxu0 0.0
    %55 = vmatpush1.msra.mxu0 %v29
    %56 = vmatprep.subr.mxu0 0.0
    %57 = vmatpush1.msra.mxu0 %v30
    %58 = vmatprep.subr.mxu0 0.0
    %59 = vmatpush1.msra.mxu0 %v31
    %60 = vmatprep.subr.mxu0 0.0
    %61 = vmatpush1.msra.mxu0 %v32
    %62 = vmatprep.subr.mxu0 0.0
    %63 = vmatpush1.msra.mxu0 %v33
    %64 = vmatprep.subr.mxu0 0.0
    %65 = vmatpush1.msra.mxu0 %v34
    %66 = vmatprep.subr.mxu0 0.0
    %67 = vmatpush1.msra.mxu0 %v35
    %68 = vmatprep.subr.mxu0 0.0
    %69 = vmatpush1.msra.mxu0 0.0
    %70 = vmatprep.subr.mxu0 0.0
    %71 = vmatpush1.msra.mxu0 0.0
    %72 = vmatprep.subr.mxu0 0.0
    %73 = vmatpush1.msra.mxu0 0.0
    %74 = vmatprep.subr.mxu0 0.0
    %75 = vmatpush1.msra.mxu0 0.0
    %76 = vmatprep.subr.mxu0 0.0
    %77 = vmatpush1.msra.mxu0 0.0
    %78 = vmatprep.subr.mxu0 0.0
    %79 = vmatpush1.msra.mxu0 0.0
    %80 = vmatprep.subr.mxu0 0.0
    %81 = vmatpush1.msra.mxu0 0.0
    %82 = vmatprep.subr.mxu0 0.0
    %83 = vmatpush1.msra.mxu0 0.0
    %84 = vmatprep.subr.mxu0 0.0
    %85 = vmatpush1.msra.mxu0 0.0
    %86 = vmatprep.subr.mxu0 0.0
    %87 = vmatpush1.msra.mxu0 0.0
    %88 = vmatprep.subr.mxu0 0.0
    %89 = vmatpush1.msra.mxu0 0.0
    %90 = vmatprep.subr.mxu0 0.0
    %91 = vmatpush1.msra.mxu0 0.0
    %92 = vmatprep.subr.mxu0 0.0
    %93 = vmatpush1.msra.mxu0 0.0
    %94 = vmatprep.subr.mxu0 0.0
    %95 = vmatpush1.msra.mxu0 0.0
    %96 = vmatprep.subr.mxu0 0.0
    %97 = vmatpush1.msra.mxu0 0.0
    %98 = vmatprep.subr.mxu0 0.0
    %99 = vmatpush1.msra.mxu0 0.0
    %100 = vmatprep.mubr.f32.mxu0 0.0
    %101 = vmatmul.mubr.f32.gmra.mrb[0].mxu0 %v18
    %v102 = vpop.f32.mrb[0].mxu0
    %v103 = vadd.f32 0.0, %v102
    %v104 = vpop.f32.mrb[0].mxu0
    %105 = vmatprep.mubr.f32.mxu0 0.0
    %106 = vmatmul.mubr.f32.gmra.mrb[0].mxu0 %v19
    %v107 = vpop.f32.mrb[0].mxu0
    %v108 = vadd.f32 0.0, %v107
    %v109 = vpop.f32.mrb[0].mxu0
    %110 = vdwg.mxu0
    %v111 = vlaneseq
    %v112 = vshrl.u32 %v111, 7
    %v113 = vlaneseq
    %v114 = vand.u32 %v113, 127
    %vm115 = vcmp.gt.s32.totalorder %v114, %v112
    %117 = vrot.lane.b32.xlu0 %v103, 96
    %v118 = vpop.permute.xlu0 %117
    %vm119 = vcmask 64512
    %v120 = vsel %vm119, %v103, 0
    %v122 = vsel %vm119, %v118, 0
    %124 = vmatprep.subr.mxu0 0.0
    %125 = vmatpush1.xpose.msra.mxu0 %v122
    %126 = vmatprep.subr.mxu0 0.0
    %127 = vmatpush1.xpose.msra.mxu0 0.0
    %128 = vmatprep.subr.mxu0 0.0
    %129 = vmatpush1.xpose.msra.mxu0 0.0
    %130 = vmatprep.subr.mxu0 0.0
    %131 = vmatpush1.xpose.msra.mxu0 0.0
    %132 = vmatprep.subr.mxu0 0.0
    %133 = vmatpush1.xpose.msra.mxu0 0.0
    %134 = vmatprep.subr.mxu0 0.0
    %135 = vmatpush1.xpose.msra.mxu0 0.0
    %136 = vmatprep.subr.mxu0 0.0
    %137 = vmatpush1.xpose.msra.mxu0 0.0
    %138 = vmatprep.subr.mxu0 0.0
    %139 = vmatpush1.xpose.msra.mxu0 0.0
    %140 = vmatprep.subr.mxu0 0.0
    %141 = vmatpush1.xpose.msra.mxu0 0.0
    %142 = vmatprep.subr.mxu0 0.0
    %143 = vmatpush1.xpose.msra.mxu0 0.0
    %144 = vmatprep.subr.mxu0 0.0
    %145 = vmatpush1.xpose.msra.mxu0 0.0
    %146 = vmatprep.subr.mxu0 0.0
    %147 = vmatpush1.xpose.msra.mxu0 0.0
    %148 = vmatprep.subr.mxu0 0.0
    %149 = vmatpush1.xpose.msra.mxu0 0.0
    %150 = vmatprep.subr.mxu0 0.0
    %151 = vmatpush1.xpose.msra.mxu0 0.0
    %152 = vmatprep.subr.mxu0 0.0
    %153 = vmatpush1.xpose.msra.mxu0 0.0
    %154 = vmatprep.subr.mxu0 0.0
    %155 = vmatpush1.xpose.msra.mxu0 0.0
    %156 = vmatprep.subr.mxu0 0.0
    %157 = vmatpush1.xpose.msra.mxu0 0.0
    %158 = vmatprep.subr.mxu0 0.0
    %159 = vmatpush1.xpose.msra.mxu0 0.0
    %160 = vmatprep.subr.mxu0 0.0
    %161 = vmatpush1.xpose.msra.mxu0 0.0
    %162 = vmatprep.subr.mxu0 0.0
    %163 = vmatpush1.xpose.msra.mxu0 0.0
    %164 = vmatprep.subr.mxu0 0.0
    %165 = vmatpush1.xpose.msra.mxu0 0.0
    %166 = vmatprep.subr.mxu0 0.0
    %167 = vmatpush1.xpose.msra.mxu0 0.0
    %168 = vmatprep.subr.mxu0 0.0
    %169 = vmatpush1.xpose.msra.mxu0 0.0
    %170 = vmatprep.subr.mxu0 0.0
    %171 = vmatpush1.xpose.msra.mxu0 0.0
    %172 = vmatprep.subr.mxu0 0.0
    %173 = vmatpush1.xpose.msra.mxu0 0.0
    %174 = vmatprep.subr.mxu0 0.0
    %175 = vmatpush1.xpose.msra.mxu0 0.0
    %176 = vmatprep.subr.mxu0 0.0
    %177 = vmatpush1.xpose.msra.mxu0 0.0
    %178 = vmatprep.subr.mxu0 0.0
    %179 = vmatpush1.xpose.msra.mxu0 0.0
    %180 = vmatprep.subr.mxu0 0.0
    %181 = vmatpush1.xpose.msra.mxu0 0.0
    %182 = vmatprep.subr.mxu0 0.0
    %183 = vmatpush1.xpose.msra.mxu0 0.0
    %184 = vmatprep.subr.mxu0 0.0
    %185 = vmatpush1.xpose.msra.mxu0 0.0
    %186 = vmatprep.subr.mxu0 0.0
    %187 = vmatpush1.xpose.msra.mxu0 0.0
    %188 = vmatprep.mubr.f32.mxu0 0.0
    %189 = vmatmul.mubr.f32.gmra.mrb[0].mxu0 %v120
    %v190 = vpop.f32.mrb[0].mxu0
    %v191 = vadd.f32 0.0, %v190
    %v192 = vpop.f32.mrb[0].mxu0
    %193 = vdwg.mxu0
    %195 = vrot.lane.b32.xlu0 %v108, 96
    %v196 = vpop.permute.xlu0 %195
    %v197 = vsel %vm119, %v108, 0
    %v199 = vsel %vm119, %v196, 0
    %201 = vmatprep.subr.mxu0 0.0
    %202 = vmatpush1.xpose.msra.mxu0 %v199
    %203 = vmatprep.subr.mxu0 0.0
    %204 = vmatpush1.xpose.msra.mxu0 0.0
    %205 = vmatprep.subr.mxu0 0.0
    %206 = vmatpush1.xpose.msra.mxu0 0.0
    %207 = vmatprep.subr.mxu0 0.0
    %208 = vmatpush1.xpose.msra.mxu0 0.0
    %209 = vmatprep.subr.mxu0 0.0
    %210 = vmatpush1.xpose.msra.mxu0 0.0
    %211 = vmatprep.subr.mxu0 0.0
    %212 = vmatpush1.xpose.msra.mxu0 0.0
    %213 = vmatprep.subr.mxu0 0.0
    %214 = vmatpush1.xpose.msra.mxu0 0.0
    %215 = vmatprep.subr.mxu0 0.0
    %216 = vmatpush1.xpose.msra.mxu0 0.0
    %217 = vmatprep.subr.mxu0 0.0
    %218 = vmatpush1.xpose.msra.mxu0 0.0
    %219 = vmatprep.subr.mxu0 0.0
    %220 = vmatpush1.xpose.msra.mxu0 0.0
    %221 = vmatprep.subr.mxu0 0.0
    %222 = vmatpush1.xpose.msra.mxu0 0.0
    %223 = vmatprep.subr.mxu0 0.0
    %224 = vmatpush1.xpose.msra.mxu0 0.0
    %225 = vmatprep.subr.mxu0 0.0
    %226 = vmatpush1.xpose.msra.mxu0 0.0
    %227 = vmatprep.subr.mxu0 0.0
    %228 = vmatpush1.xpose.msra.mxu0 0.0
    %229 = vmatprep.subr.mxu0 0.0
    %230 = vmatpush1.xpose.msra.mxu0 0.0
    %231 = vmatprep.subr.mxu0 0.0
    %232 = vmatpush1.xpose.msra.mxu0 0.0
    %233 = vmatprep.subr.mxu0 0.0
    %234 = vmatpush1.xpose.msra.mxu0 0.0
    %235 = vmatprep.subr.mxu0 0.0
    %236 = vmatpush1.xpose.msra.mxu0 0.0
    %237 = vmatprep.subr.mxu0 0.0
    %238 = vmatpush1.xpose.msra.mxu0 0.0
    %239 = vmatprep.subr.mxu0 0.0
    %240 = vmatpush1.xpose.msra.mxu0 0.0
    %241 = vmatprep.subr.mxu0 0.0
    %242 = vmatpush1.xpose.msra.mxu0 0.0
    %243 = vmatprep.subr.mxu0 0.0
    %244 = vmatpush1.xpose.msra.mxu0 0.0
    %245 = vmatprep.subr.mxu0 0.0
    %246 = vmatpush1.xpose.msra.mxu0 0.0
    %247 = vmatprep.subr.mxu0 0.0
    %248 = vmatpush1.xpose.msra.mxu0 0.0
    %249 = vmatprep.subr.mxu0 0.0
    %250 = vmatpush1.xpose.msra.mxu0 0.0
    %251 = vmatprep.subr.mxu0 0.0
    %252 = vmatpush1.xpose.msra.mxu0 0.0
    %253 = vmatprep.subr.mxu0 0.0
    %254 = vmatpush1.xpose.msra.mxu0 0.0
    %255 = vmatprep.subr.mxu0 0.0
    %256 = vmatpush1.xpose.msra.mxu0 0.0
    %257 = vmatprep.subr.mxu0 0.0
    %258 = vmatpush1.xpose.msra.mxu0 0.0
    %259 = vmatprep.subr.mxu0 0.0
    %260 = vmatpush1.xpose.msra.mxu0 0.0
    %261 = vmatprep.subr.mxu0 0.0
    %262 = vmatpush1.xpose.msra.mxu0 0.0
    %263 = vmatprep.subr.mxu0 0.0
    %264 = vmatpush1.xpose.msra.mxu0 0.0
    %265 = vmatprep.mubr.f32.mxu0 0.0
    %266 = vmatmul.mubr.f32.gmra.mrb[0].mxu0 %v197
    %v267 = vpop.f32.mrb[0].mxu0
    %v268 = vadd.f32 0.0, %v267
    %v269 = vpop.f32.mrb[0].mxu0
    %270 = vdwg.mxu0
    %v271 = vsel %vm115, 1, 0
    %vm272 = vcmp.eq.s32.totalorder %v271, 1
    %v273 = vsel %vm272, -inf, %v191
    %v274 = vsel %vm272, -inf, %v268
    %v275 = vsel %vm119, %v273, -inf
    %276 = vmax.xlane.f32.xlu0 %v275
    %v277 = vpop.xlane.xlu0 %276
    %v278 = vsel %vm119, %v274, -inf
    %279 = vmax.xlane.f32.xlu0 %v278
    %v280 = vpop.xlane.xlu0 %279
    %v281 = vsub.f32 %v273, %v277
    %v282 = vsub.f32 %v274, %v280
    %v283 = vmul.f32 %v281, 1.442695
    %v284 = vpow.pop %v283
    %v285 = vmul.f32 %v282, 1.442695
    %v286 = vpow.pop %v285
    %v287 = vsel %vm119, %v284, 0.0
    %288 = vadd.xlane.f32.xlu0 %v287
    %v289 = vpop.xlane.xlu0 %288
    %v290 = vsel %vm119, %v286, 0.0
    %291 = vadd.xlane.f32.xlu0 %v290
    %v292 = vpop.xlane.xlu0 %291
    %v293 = vrcp.pop %v289
    %v294 = vrcp.pop %v292
    %v295 = vmul.f32 %v284, %v293
    %v296 = vmul.f32 %v286, %v294
    %297 = vrot.lane.b32.xlu0 %v103, 64
    %v298 = vpop.permute.xlu0 %297
    %v301 = vsel %vm119, %v295, 0
    %303 = vmatprep.subr.mxu0 0.0
    %304 = vmatpush1.msra.mxu0 %v298
    %305 = vmatprep.subr.mxu0 0.0
    %306 = vmatpush1.msra.mxu0 0.0
    %307 = vmatprep.subr.mxu0 0.0
    %308 = vmatpush1.msra.mxu0 0.0
    %309 = vmatprep.subr.mxu0 0.0
    %310 = vmatpush1.msra.mxu0 0.0
    %311 = vmatprep.subr.mxu0 0.0
    %312 = vmatpush1.msra.mxu0 0.0
    %313 = vmatprep.subr.mxu0 0.0
    %314 = vmatpush1.msra.mxu0 0.0
    %315 = vmatprep.subr.mxu0 0.0
    %316 = vmatpush1.msra.mxu0 0.0
    %317 = vmatprep.subr.mxu0 0.0
    %318 = vmatpush1.msra.mxu0 0.0
    %319 = vmatprep.subr.mxu0 0.0
    %320 = vmatpush1.msra.mxu0 0.0
    %321 = vmatprep.subr.mxu0 0.0
    %322 = vmatpush1.msra.mxu0 0.0
    %323 = vmatprep.subr.mxu0 0.0
    %324 = vmatpush1.msra.mxu0 0.0
    %325 = vmatprep.subr.mxu0 0.0
    %326 = vmatpush1.msra.mxu0 0.0
    %327 = vmatprep.subr.mxu0 0.0
    %328 = vmatpush1.msra.mxu0 0.0
    %329 = vmatprep.subr.mxu0 0.0
    %330 = vmatpush1.msra.mxu0 0.0
    %331 = vmatprep.subr.mxu0 0.0
    %332 = vmatpush1.msra.mxu0 0.0
    %333 = vmatprep.subr.mxu0 0.0
    %334 = vmatpush1.msra.mxu0 0.0
    %335 = vmatprep.subr.mxu0 0.0
    %336 = vmatpush1.msra.mxu0 0.0
    %337 = vmatprep.subr.mxu0 0.0
    %338 = vmatpush1.msra.mxu0 0.0
    %339 = vmatprep.subr.mxu0 0.0
    %340 = vmatpush1.msra.mxu0 0.0
    %341 = vmatprep.subr.mxu0 0.0
    %342 = vmatpush1.msra.mxu0 0.0
    %343 = vmatprep.subr.mxu0 0.0
    %344 = vmatpush1.msra.mxu0 0.0
    %345 = vmatprep.subr.mxu0 0.0
    %346 = vmatpush1.msra.mxu0 0.0
    %347 = vmatprep.subr.mxu0 0.0
    %348 = vmatpush1.msra.mxu0 0.0
    %349 = vmatprep.subr.mxu0 0.0
    %350 = vmatpush1.msra.mxu0 0.0
    %351 = vmatprep.subr.mxu0 0.0
    %352 = vmatpush1.msra.mxu0 0.0
    %353 = vmatprep.subr.mxu0 0.0
    %354 = vmatpush1.msra.mxu0 0.0
    %355 = vmatprep.subr.mxu0 0.0
    %356 = vmatpush1.msra.mxu0 0.0
    %357 = vmatprep.subr.mxu0 0.0
    %358 = vmatpush1.msra.mxu0 0.0
    %359 = vmatprep.subr.mxu0 0.0
    %360 = vmatpush1.msra.mxu0 0.0
    %361 = vmatprep.subr.mxu0 0.0
    %362 = vmatpush1.msra.mxu0 0.0
    %363 = vmatprep.subr.mxu0 0.0
    %364 = vmatpush1.msra.mxu0 0.0
    %365 = vmatprep.subr.mxu0 0.0
    %366 = vmatpush1.msra.mxu0 0.0
    %367 = vmatprep.mubr.f32.mxu0 0.0
    %368 = vmatmul.mubr.f32.gmra.mrb[0].mxu0 %v301
    %v369 = vpop.f32.mrb[0].mxu0
    %v370 = vadd.f32 0.0, %v369
    %v371 = vpop.f32.mrb[0].mxu0
    %372 = vdwg.mxu0
    %373 = vrot.lane.b32.xlu0 %v108, 64
    %v374 = vpop.permute.xlu0 %373
    %v377 = vsel %vm119, %v296, 0
    %379 = vmatprep.subr.mxu0 0.0
    %380 = vmatpush1.msra.mxu0 %v374
    %381 = vmatprep.subr.mxu0 0.0
    %382 = vmatpush1.msra.mxu0 0.0
    %383 = vmatprep.subr.mxu0 0.0
    %384 = vmatpush1.msra.mxu0 0.0
    %385 = vmatprep.subr.mxu0 0.0
    %386 = vmatpush1.msra.mxu0 0.0
    %387 = vmatprep.subr.mxu0 0.0
    %388 = vmatpush1.msra.mxu0 0.0
    %389 = vmatprep.subr.mxu0 0.0
    %390 = vmatpush1.msra.mxu0 0.0
    %391 = vmatprep.subr.mxu0 0.0
    %392 = vmatpush1.msra.mxu0 0.0
    %393 = vmatprep.subr.mxu0 0.0
    %394 = vmatpush1.msra.mxu0 0.0
    %395 = vmatprep.subr.mxu0 0.0
    %396 = vmatpush1.msra.mxu0 0.0
    %397 = vmatprep.subr.mxu0 0.0
    %398 = vmatpush1.msra.mxu0 0.0
    %399 = vmatprep.subr.mxu0 0.0
    %400 = vmatpush1.msra.mxu0 0.0
    %401 = vmatprep.subr.mxu0 0.0
    %402 = vmatpush1.msra.mxu0 0.0
    %403 = vmatprep.subr.mxu0 0.0
    %404 = vmatpush1.msra.mxu0 0.0
    %405 = vmatprep.subr.mxu0 0.0
    %406 = vmatpush1.msra.mxu0 0.0
    %407 = vmatprep.subr.mxu0 0.0
    %408 = vmatpush1.msra.mxu0 0.0
    %409 = vmatprep.subr.mxu0 0.0
    %410 = vmatpush1.msra.mxu0 0.0
    %411 = vmatprep.subr.mxu0 0.0
    %412 = vmatpush1.msra.mxu0 0.0
    %413 = vmatprep.subr.mxu0 0.0
    %414 = vmatpush1.msra.mxu0 0.0
    %415 = vmatprep.subr.mxu0 0.0
    %416 = vmatpush1.msra.mxu0 0.0
    %417 = vmatprep.subr.mxu0 0.0
    %418 = vmatpush1.msra.mxu0 0.0
    %419 = vmatprep.subr.mxu0 0.0
    %420 = vmatpush1.msra.mxu0 0.0
    %421 = vmatprep.subr.mxu0 0.0
    %422 = vmatpush1.msra.mxu0 0.0
    %423 = vmatprep.subr.mxu0 0.0
    %424 = vmatpush1.msra.mxu0 0.0
    %425 = vmatprep.subr.mxu0 0.0
    %426 = vmatpush1.msra.mxu0 0.0
    %427 = vmatprep.subr.mxu0 0.0
    %428 = vmatpush1.msra.mxu0 0.0
    %429 = vmatprep.subr.mxu0 0.0
    %430 = vmatpush1.msra.mxu0 0.0
    %431 = vmatprep.subr.mxu0 0.0
    %432 = vmatpush1.msra.mxu0 0.0
    %433 = vmatprep.subr.mxu0 0.0
    %434 = vmatpush1.msra.mxu0 0.0
    %435 = vmatprep.subr.mxu0 0.0
    %436 = vmatpush1.msra.mxu0 0.0
    %437 = vmatprep.subr.mxu0 0.0
    %438 = vmatpush1.msra.mxu0 0.0
    %439 = vmatprep.subr.mxu0 0.0
    %440 = vmatpush1.msra.mxu0 0.0
    %441 = vmatprep.subr.mxu0 0.0
    %442 = vmatpush1.msra.mxu0 0.0
    %443 = vmatprep.mubr.f32.mxu0 0.0
    %444 = vmatmul.mubr.f32.gmra.mrb[0].mxu0 %v377
    %v445 = vpop.f32.mrb[0].mxu0
    %v446 = vadd.f32 0.0, %v445
    %v447 = vpop.f32.mrb[0].mxu0
    %448 = vdwg.mxu0
    %449 = vrot.lane.b32.xlu0 %v103, 120
    %v450 = vpop.permute.xlu0 %449
    %451 = vrot.lane.b32.xlu0 %v103, 88
    %v452 = vpop.permute.xlu0 %451
    %v453 = vsel %vm119, %v450, 0
    %v455 = vsel %vm119, %v452, 0
    %457 = vmatprep.subr.mxu0 0.0
    %458 = vmatpush1.xpose.msra.mxu0 %v455
    %459 = vmatprep.subr.mxu0 0.0
    %460 = vmatpush1.xpose.msra.mxu0 0.0
    %461 = vmatprep.subr.mxu0 0.0
    %462 = vmatpush1.xpose.msra.mxu0 0.0
    %463 = vmatprep.subr.mxu0 0.0
    %464 = vmatpush1.xpose.msra.mxu0 0.0
    %465 = vmatprep.subr.mxu0 0.0
    %466 = vmatpush1.xpose.msra.mxu0 0.0
    %467 = vmatprep.subr.mxu0 0.0
    %468 = vmatpush1.xpose.msra.mxu0 0.0
    %469 = vmatprep.subr.mxu0 0.0
    %470 = vmatpush1.xpose.msra.mxu0 0.0
    %471 = vmatprep.subr.mxu0 0.0
    %472 = vmatpush1.xpose.msra.mxu0 0.0
    %473 = vmatprep.subr.mxu0 0.0
    %474 = vmatpush1.xpose.msra.mxu0 0.0
    %475 = vmatprep.subr.mxu0 0.0
    %476 = vmatpush1.xpose.msra.mxu0 0.0
    %477 = vmatprep.subr.mxu0 0.0
    %478 = vmatpush1.xpose.msra.mxu0 0.0
    %479 = vmatprep.subr.mxu0 0.0
    %480 = vmatpush1.xpose.msra.mxu0 0.0
    %481 = vmatprep.subr.mxu0 0.0
    %482 = vmatpush1.xpose.msra.mxu0 0.0
    %483 = vmatprep.subr.mxu0 0.0
    %484 = vmatpush1.xpose.msra.mxu0 0.0
    %485 = vmatprep.subr.mxu0 0.0
    %486 = vmatpush1.xpose.msra.mxu0 0.0
    %487 = vmatprep.subr.mxu0 0.0
    %488 = vmatpush1.xpose.msra.mxu0 0.0
    %489 = vmatprep.subr.mxu0 0.0
    %490 = vmatpush1.xpose.msra.mxu0 0.0
    %491 = vmatprep.subr.mxu0 0.0
    %492 = vmatpush1.xpose.msra.mxu0 0.0
    %493 = vmatprep.subr.mxu0 0.0
    %494 = vmatpush1.xpose.msra.mxu0 0.0
    %495 = vmatprep.subr.mxu0 0.0
    %496 = vmatpush1.xpose.msra.mxu0 0.0
    %497 = vmatprep.subr.mxu0 0.0
    %498 = vmatpush1.xpose.msra.mxu0 0.0
    %499 = vmatprep.subr.mxu0 0.0
    %500 = vmatpush1.xpose.msra.mxu0 0.0
    %501 = vmatprep.subr.mxu0 0.0
    %502 = vmatpush1.xpose.msra.mxu0 0.0
    %503 = vmatprep.subr.mxu0 0.0
    %504 = vmatpush1.xpose.msra.mxu0 0.0
    %505 = vmatprep.subr.mxu0 0.0
    %506 = vmatpush1.xpose.msra.mxu0 0.0
    %507 = vmatprep.subr.mxu0 0.0
    %508 = vmatpush1.xpose.msra.mxu0 0.0
    %509 = vmatprep.subr.mxu0 0.0
    %510 = vmatpush1.xpose.msra.mxu0 0.0
    %511 = vmatprep.subr.mxu0 0.0
    %512 = vmatpush1.xpose.msra.mxu0 0.0
    %513 = vmatprep.subr.mxu0 0.0
    %514 = vmatpush1.xpose.msra.mxu0 0.0
    %515 = vmatprep.subr.mxu0 0.0
    %516 = vmatpush1.xpose.msra.mxu0 0.0
    %517 = vmatprep.subr.mxu0 0.0
    %518 = vmatpush1.xpose.msra.mxu0 0.0
    %519 = vmatprep.subr.mxu0 0.0
    %520 = vmatpush1.xpose.msra.mxu0 0.0
    %521 = vmatprep.mubr.f32.mxu0 0.0
    %522 = vmatmul.mubr.f32.gmra.mrb[0].mxu0 %v453
    %v523 = vpop.f32.mrb[0].mxu0
    %v524 = vadd.f32 0.0, %v523
    %v525 = vpop.f32.mrb[0].mxu0
    %526 = vdwg.mxu0
    %527 = vrot.lane.b32.xlu0 %v108, 120
    %v528 = vpop.permute.xlu0 %527
    %529 = vrot.lane.b32.xlu0 %v108, 88
    %v530 = vpop.permute.xlu0 %529
    %v531 = vsel %vm119, %v528, 0
    %v533 = vsel %vm119, %v530, 0
    %535 = vmatprep.subr.mxu0 0.0
    %536 = vmatpush1.xpose.msra.mxu0 %v533
    %537 = vmatprep.subr.mxu0 0.0
    %538 = vmatpush1.xpose.msra.mxu0 0.0
    %539 = vmatprep.subr.mxu0 0.0
    %540 = vmatpush1.xpose.msra.mxu0 0.0
    %541 = vmatprep.subr.mxu0 0.0
    %542 = vmatpush1.xpose.msra.mxu0 0.0
    %543 = vmatprep.subr.mxu0 0.0
    %544 = vmatpush1.xpose.msra.mxu0 0.0
    %545 = vmatprep.subr.mxu0 0.0
    %546 = vmatpush1.xpose.msra.mxu0 0.0
    %547 = vmatprep.subr.mxu0 0.0
    %548 = vmatpush1.xpose.msra.mxu0 0.0
    %549 = vmatprep.subr.mxu0 0.0
    %550 = vmatpush1.xpose.msra.mxu0 0.0
    %551 = vmatprep.subr.mxu0 0.0
    %552 = vmatpush1.xpose.msra.mxu0 0.0
    %553 = vmatprep.subr.mxu0 0.0
    %554 = vmatpush1.xpose.msra.mxu0 0.0
    %555 = vmatprep.subr.mxu0 0.0
    %556 = vmatpush1.xpose.msra.mxu0 0.0
    %557 = vmatprep.subr.mxu0 0.0
    %558 = vmatpush1.xpose.msra.mxu0 0.0
    %559 = vmatprep.subr.mxu0 0.0
    %560 = vmatpush1.xpose.msra.mxu0 0.0
    %561 = vmatprep.subr.mxu0 0.0
    %562 = vmatpush1.xpose.msra.mxu0 0.0
    %563 = vmatprep.subr.mxu0 0.0
    %564 = vmatpush1.xpose.msra.mxu0 0.0
    %565 = vmatprep.subr.mxu0 0.0
    %566 = vmatpush1.xpose.msra.mxu0 0.0
    %567 = vmatprep.subr.mxu0 0.0
    %568 = vmatpush1.xpose.msra.mxu0 0.0
    %569 = vmatprep.subr.mxu0 0.0
    %570 = vmatpush1.xpose.msra.mxu0 0.0
    %571 = vmatprep.subr.mxu0 0.0
    %572 = vmatpush1.xpose.msra.mxu0 0.0
    %573 = vmatprep.subr.mxu0 0.0
    %574 = vmatpush1.xpose.msra.mxu0 0.0
    %575 = vmatprep.subr.mxu0 0.0
    %576 = vmatpush1.xpose.msra.mxu0 0.0
    %577 = vmatprep.subr.mxu0 0.0
    %578 = vmatpush1.xpose.msra.mxu0 0.0
    %579 = vmatprep.subr.mxu0 0.0
    %580 = vmatpush1.xpose.msra.mxu0 0.0
    %581 = vmatprep.subr.mxu0 0.0
    %582 = vmatpush1.xpose.msra.mxu0 0.0
    %583 = vmatprep.subr.mxu0 0.0
    %584 = vmatpush1.xpose.msra.mxu0 0.0
    %585 = vmatprep.subr.mxu0 0.0
    %586 = vmatpush1.xpose.msra.mxu0 0.0
    %587 = vmatprep.subr.mxu0 0.0
    %588 = vmatpush1.xpose.msra.mxu0 0.0
    %589 = vmatprep.subr.mxu0 0.0
    %590 = vmatpush1.xpose.msra.mxu0 0.0
    %591 = vmatprep.subr.mxu0 0.0
    %592 = vmatpush1.xpose.msra.mxu0 0.0
    %593 = vmatprep.subr.mxu0 0.0
    %594 = vmatpush1.xpose.msra.mxu0 0.0
    %595 = vmatprep.subr.mxu0 0.0
    %596 = vmatpush1.xpose.msra.mxu0 0.0
    %597 = vmatprep.subr.mxu0 0.0
    %598 = vmatpush1.xpose.msra.mxu0 0.0
    %599 = vmatprep.mubr.f32.mxu0 0.0
    %600 = vmatmul.mubr.f32.gmra.mrb[0].mxu0 %v531
    %v601 = vpop.f32.mrb[0].mxu0
    %v602 = vadd.f32 0.0, %v601
    %v603 = vpop.f32.mrb[0].mxu0
    %604 = vdwg.mxu0
    %v605 = vsel %vm272, -inf, %v524
    %v606 = vsel %vm272, -inf, %v602
    %v607 = vsel %vm119, %v605, -inf
    %608 = vmax.xlane.f32.xlu0 %v607
    %v609 = vpop.xlane.xlu0 %608
    %v610 = vsel %vm119, %v606, -inf
    %611 = vmax.xlane.f32.xlu0 %v610
    %v612 = vpop.xlane.xlu0 %611
    %v613 = vsub.f32 %v605, %v609
    %v614 = vsub.f32 %v606, %v612
    %v615 = vmul.f32 %v613, 1.442695
    %v616 = vpow.pop %v615
    %v617 = vmul.f32 %v614, 1.442695
    %v618 = vpow.pop %v617
    %v619 = vsel %vm119, %v616, 0.0
    %620 = vadd.xlane.f32.xlu0 %v619
    %v621 = vpop.xlane.xlu0 %620
    %v622 = vsel %vm119, %v618, 0.0
    %623 = vadd.xlane.f32.xlu0 %v622
    %v624 = vpop.xlane.xlu0 %623
    %v625 = vrcp.pop %v621
    %v626 = vrcp.pop %v624
    %v627 = vmul.f32 %v616, %v625
    %v628 = vmul.f32 %v618, %v626
    %629 = vrot.lane.b32.xlu0 %v103, 56
    %v630 = vpop.permute.xlu0 %629
    %v633 = vsel %vm119, %v627, 0
    %635 = vmatprep.subr.mxu0 0.0
    %636 = vmatpush1.msra.mxu0 %v630
    %637 = vmatprep.subr.mxu0 0.0
    %638 = vmatpush1.msra.mxu0 0.0
    %639 = vmatprep.subr.mxu0 0.0
    %640 = vmatpush1.msra.mxu0 0.0
    %641 = vmatprep.subr.mxu0 0.0
    %642 = vmatpush1.msra.mxu0 0.0
    %643 = vmatprep.subr.mxu0 0.0
    %644 = vmatpush1.msra.mxu0 0.0
    %645 = vmatprep.subr.mxu0 0.0
    %646 = vmatpush1.msra.mxu0 0.0
    %647 = vmatprep.subr.mxu0 0.0
    %648 = vmatpush1.msra.mxu0 0.0
    %649 = vmatprep.subr.mxu0 0.0
    %650 = vmatpush1.msra.mxu0 0.0
    %651 = vmatprep.subr.mxu0 0.0
    %652 = vmatpush1.msra.mxu0 0.0
    %653 = vmatprep.subr.mxu0 0.0
    %654 = vmatpush1.msra.mxu0 0.0
    %655 = vmatprep.subr.mxu0 0.0
    %656 = vmatpush1.msra.mxu0 0.0
    %657 = vmatprep.subr.mxu0 0.0
    %658 = vmatpush1.msra.mxu0 0.0
    %659 = vmatprep.subr.mxu0 0.0
    %660 = vmatpush1.msra.mxu0 0.0
    %661 = vmatprep.subr.mxu0 0.0
    %662 = vmatpush1.msra.mxu0 0.0
    %663 = vmatprep.subr.mxu0 0.0
    %664 = vmatpush1.msra.mxu0 0.0
    %665 = vmatprep.subr.mxu0 0.0
    %666 = vmatpush1.msra.mxu0 0.0
    %667 = vmatprep.subr.mxu0 0.0
    %668 = vmatpush1.msra.mxu0 0.0
    %669 = vmatprep.subr.mxu0 0.0
    %670 = vmatpush1.msra.mxu0 0.0
    %671 = vmatprep.subr.mxu0 0.0
    %672 = vmatpush1.msra.mxu0 0.0
    %673 = vmatprep.subr.mxu0 0.0
    %674 = vmatpush1.msra.mxu0 0.0
    %675 = vmatprep.subr.mxu0 0.0
    %676 = vmatpush1.msra.mxu0 0.0
    %677 = vmatprep.subr.mxu0 0.0
    %678 = vmatpush1.msra.mxu0 0.0
    %679 = vmatprep.subr.mxu0 0.0
    %680 = vmatpush1.msra.mxu0 0.0
    %681 = vmatprep.subr.mxu0 0.0
    %682 = vmatpush1.msra.mxu0 0.0
    %683 = vmatprep.subr.mxu0 0.0
    %684 = vmatpush1.msra.mxu0 0.0
    %685 = vmatprep.subr.mxu0 0.0
    %686 = vmatpush1.msra.mxu0 0.0
    %687 = vmatprep.subr.mxu0 0.0
    %688 = vmatpush1.msra.mxu0 0.0
    %689 = vmatprep.subr.mxu0 0.0
    %690 = vmatpush1.msra.mxu0 0.0
    %691 = vmatprep.subr.mxu0 0.0
    %692 = vmatpush1.msra.mxu0 0.0
    %693 = vmatprep.subr.mxu0 0.0
    %694 = vmatpush1.msra.mxu0 0.0
    %695 = vmatprep.subr.mxu0 0.0
    %696 = vmatpush1.msra.mxu0 0.0
    %697 = vmatprep.subr.mxu0 0.0
    %698 = vmatpush1.msra.mxu0 0.0
    %699 = vmatprep.mubr.f32.mxu0 0.0
    %700 = vmatmul.mubr.f32.gmra.mrb[0].mxu0 %v633
    %v701 = vpop.f32.mrb[0].mxu0
    %v702 = vadd.f32 0.0, %v701
    %v703 = vpop.f32.mrb[0].mxu0
    %704 = vdwg.mxu0
    %705 = vrot.lane.b32.xlu0 %v108, 56
    %v706 = vpop.permute.xlu0 %705
    %v709 = vsel %vm119, %v628, 0
    %711 = vmatprep.subr.mxu0 0.0
    %712 = vmatpush1.msra.mxu0 %v706
    %713 = vmatprep.subr.mxu0 0.0
    %714 = vmatpush1.msra.mxu0 0.0
    %715 = vmatprep.subr.mxu0 0.0
    %716 = vmatpush1.msra.mxu0 0.0
    %717 = vmatprep.subr.mxu0 0.0
    %718 = vmatpush1.msra.mxu0 0.0
    %719 = vmatprep.subr.mxu0 0.0
    %720 = vmatpush1.msra.mxu0 0.0
    %721 = vmatprep.subr.mxu0 0.0
    %722 = vmatpush1.msra.mxu0 0.0
    %723 = vmatprep.subr.mxu0 0.0
    %724 = vmatpush1.msra.mxu0 0.0
    %725 = vmatprep.subr.mxu0 0.0
    %726 = vmatpush1.msra.mxu0 0.0
    %727 = vmatprep.subr.mxu0 0.0
    %728 = vmatpush1.msra.mxu0 0.0
    %729 = vmatprep.subr.mxu0 0.0
    %730 = vmatpush1.msra.mxu0 0.0
    %731 = vmatprep.subr.mxu0 0.0
    %732 = vmatpush1.msra.mxu0 0.0
    %733 = vmatprep.subr.mxu0 0.0
    %734 = vmatpush1.msra.mxu0 0.0
    %735 = vmatprep.subr.mxu0 0.0
    %736 = vmatpush1.msra.mxu0 0.0
    %737 = vmatprep.subr.mxu0 0.0
    %738 = vmatpush1.msra.mxu0 0.0
    %739 = vmatprep.subr.mxu0 0.0
    %740 = vmatpush1.msra.mxu0 0.0
    %741 = vmatprep.subr.mxu0 0.0
    %742 = vmatpush1.msra.mxu0 0.0
    %743 = vmatprep.subr.mxu0 0.0
    %744 = vmatpush1.msra.mxu0 0.0
    %745 = vmatprep.subr.mxu0 0.0
    %746 = vmatpush1.msra.mxu0 0.0
    %747 = vmatprep.subr.mxu0 0.0
    %748 = vmatpush1.msra.mxu0 0.0
    %749 = vmatprep.subr.mxu0 0.0
    %750 = vmatpush1.msra.mxu0 0.0
    %751 = vmatprep.subr.mxu0 0.0
    %752 = vmatpush1.msra.mxu0 0.0
    %753 = vmatprep.subr.mxu0 0.0
    %754 = vmatpush1.msra.mxu0 0.0
    %755 = vmatprep.subr.mxu0 0.0
    %756 = vmatpush1.msra.mxu0 0.0
    %757 = vmatprep.subr.mxu0 0.0
    %758 = vmatpush1.msra.mxu0 0.0
    %759 = vmatprep.subr.mxu0 0.0
    %760 = vmatpush1.msra.mxu0 0.0
    %761 = vmatprep.subr.mxu0 0.0
    %762 = vmatpush1.msra.mxu0 0.0
    %763 = vmatprep.subr.mxu0 0.0
    %764 = vmatpush1.msra.mxu0 0.0
    %765 = vmatprep.subr.mxu0 0.0
    %766 = vmatpush1.msra.mxu0 0.0
    %767 = vmatprep.subr.mxu0 0.0
    %768 = vmatpush1.msra.mxu0 0.0
    %769 = vmatprep.subr.mxu0 0.0
    %770 = vmatpush1.msra.mxu0 0.0
    %771 = vmatprep.subr.mxu0 0.0
    %772 = vmatpush1.msra.mxu0 0.0
    %773 = vmatprep.subr.mxu0 0.0
    %774 = vmatpush1.msra.mxu0 0.0
    %775 = vmatprep.mubr.f32.mxu0 0.0
    %776 = vmatmul.mubr.f32.gmra.mrb[0].mxu0 %v709
    %v777 = vpop.f32.mrb[0].mxu0
    %v778 = vadd.f32 0.0, %v777
    %v779 = vpop.f32.mrb[0].mxu0
    %780 = vdwg.mxu0
    %781 = vrot.lane.b32.xlu0 %v103, 112
    %v782 = vpop.permute.xlu0 %781
    %783 = vrot.lane.b32.xlu0 %v103, 80
    %v784 = vpop.permute.xlu0 %783
    %v785 = vsel %vm119, %v782, 0
    %v787 = vsel %vm119, %v784, 0
    %789 = vmatprep.subr.mxu0 0.0
    %790 = vmatpush1.xpose.msra.mxu0 %v787
    %791 = vmatprep.subr.mxu0 0.0
    %792 = vmatpush1.xpose.msra.mxu0 0.0
    %793 = vmatprep.subr.mxu0 0.0
    %794 = vmatpush1.xpose.msra.mxu0 0.0
    %795 = vmatprep.subr.mxu0 0.0
    %796 = vmatpush1.xpose.msra.mxu0 0.0
    %797 = vmatprep.subr.mxu0 0.0
    %798 = vmatpush1.xpose.msra.mxu0 0.0
    %799 = vmatprep.subr.mxu0 0.0
    %800 = vmatpush1.xpose.msra.mxu0 0.0
    %801 = vmatprep.subr.mxu0 0.0
    %802 = vmatpush1.xpose.msra.mxu0 0.0
    %803 = vmatprep.subr.mxu0 0.0
    %804 = vmatpush1.xpose.msra.mxu0 0.0
    %805 = vmatprep.subr.mxu0 0.0
    %806 = vmatpush1.xpose.msra.mxu0 0.0
    %807 = vmatprep.subr.mxu0 0.0
    %808 = vmatpush1.xpose.msra.mxu0 0.0
    %809 = vmatprep.subr.mxu0 0.0
    %810 = vmatpush1.xpose.msra.mxu0 0.0
    %811 = vmatprep.subr.mxu0 0.0
    %812 = vmatpush1.xpose.msra.mxu0 0.0
    %813 = vmatprep.subr.mxu0 0.0
    %814 = vmatpush1.xpose.msra.mxu0 0.0
    %815 = vmatprep.subr.mxu0 0.0
    %816 = vmatpush1.xpose.msra.mxu0 0.0
    %817 = vmatprep.subr.mxu0 0.0
    %818 = vmatpush1.xpose.msra.mxu0 0.0
    %819 = vmatprep.subr.mxu0 0.0
    %820 = vmatpush1.xpose.msra.mxu0 0.0
    %821 = vmatprep.subr.mxu0 0.0
    %822 = vmatpush1.xpose.msra.mxu0 0.0
    %823 = vmatprep.subr.mxu0 0.0
    %824 = vmatpush1.xpose.msra.mxu0 0.0
    %825 = vmatprep.subr.mxu0 0.0
    %826 = vmatpush1.xpose.msra.mxu0 0.0
    %827 = vmatprep.subr.mxu0 0.0
    %828 = vmatpush1.xpose.msra.mxu0 0.0
    %829 = vmatprep.subr.mxu0 0.0
    %830 = vmatpush1.xpose.msra.mxu0 0.0
    %831 = vmatprep.subr.mxu0 0.0
    %832 = vmatpush1.xpose.msra.mxu0 0.0
    %833 = vmatprep.subr.mxu0 0.0
    %834 = vmatpush1.xpose.msra.mxu0 0.0
    %835 = vmatprep.subr.mxu0 0.0
    %836 = vmatpush1.xpose.msra.mxu0 0.0
    %837 = vmatprep.subr.mxu0 0.0
    %838 = vmatpush1.xpose.msra.mxu0 0.0
    %839 = vmatprep.subr.mxu0 0.0
    %840 = vmatpush1.xpose.msra.mxu0 0.0
    %841 = vmatprep.subr.mxu0 0.0
    %842 = vmatpush1.xpose.msra.mxu0 0.0
    %843 = vmatprep.subr.mxu0 0.0
    %844 = vmatpush1.xpose.msra.mxu0 0.0
    %845 = vmatprep.subr.mxu0 0.0
    %846 = vmatpush1.xpose.msra.mxu0 0.0
    %847 = vmatprep.subr.mxu0 0.0
    %848 = vmatpush1.xpose.msra.mxu0 0.0
    %849 = vmatprep.subr.mxu0 0.0
    %850 = vmatpush1.xpose.msra.mxu0 0.0
    %851 = vmatprep.subr.mxu0 0.0
    %852 = vmatpush1.xpose.msra.mxu0 0.0
    %853 = vmatprep.mubr.f32.mxu0 0.0
    %854 = vmatmul.mubr.f32.gmra.mrb[0].mxu0 %v785
    %v855 = vpop.f32.mrb[0].mxu0
    %v856 = vadd.f32 0.0, %v855
    %v857 = vpop.f32.mrb[0].mxu0
    %858 = vdwg.mxu0
    %859 = vrot.lane.b32.xlu0 %v108, 112
    %v860 = vpop.permute.xlu0 %859
    %861 = vrot.lane.b32.xlu0 %v108, 80
    %v862 = vpop.permute.xlu0 %861
    %v863 = vsel %vm119, %v860, 0
    %v865 = vsel %vm119, %v862, 0
    %867 = vmatprep.subr.mxu0 0.0
    %868 = vmatpush1.xpose.msra.mxu0 %v865
    %869 = vmatprep.subr.mxu0 0.0
    %870 = vmatpush1.xpose.msra.mxu0 0.0
    %871 = vmatprep.subr.mxu0 0.0
    %872 = vmatpush1.xpose.msra.mxu0 0.0
    %873 = vmatprep.subr.mxu0 0.0
    %874 = vmatpush1.xpose.msra.mxu0 0.0
    %875 = vmatprep.subr.mxu0 0.0
    %876 = vmatpush1.xpose.msra.mxu0 0.0
    %877 = vmatprep.subr.mxu0 0.0
    %878 = vmatpush1.xpose.msra.mxu0 0.0
    %879 = vmatprep.subr.mxu0 0.0
    %880 = vmatpush1.xpose.msra.mxu0 0.0
    %881 = vmatprep.subr.mxu0 0.0
    %882 = vmatpush1.xpose.msra.mxu0 0.0
    %883 = vmatprep.subr.mxu0 0.0
    %884 = vmatpush1.xpose.msra.mxu0 0.0
    %885 = vmatprep.subr.mxu0 0.0
    %886 = vmatpush1.xpose.msra.mxu0 0.0
    %887 = vmatprep.subr.mxu0 0.0
    %888 = vmatpush1.xpose.msra.mxu0 0.0
    %889 = vmatprep.subr.mxu0 0.0
    %890 = vmatpush1.xpose.msra.mxu0 0.0
    %891 = vmatprep.subr.mxu0 0.0
    %892 = vmatpush1.xpose.msra.mxu0 0.0
    %893 = vmatprep.subr.mxu0 0.0
    %894 = vmatpush1.xpose.msra.mxu0 0.0
    %895 = vmatprep.subr.mxu0 0.0
    %896 = vmatpush1.xpose.msra.mxu0 0.0
    %897 = vmatprep.subr.mxu0 0.0
    %898 = vmatpush1.xpose.msra.mxu0 0.0
    %899 = vmatprep.subr.mxu0 0.0
    %900 = vmatpush1.xpose.msra.mxu0 0.0
    %901 = vmatprep.subr.mxu0 0.0
    %902 = vmatpush1.xpose.msra.mxu0 0.0
    %903 = vmatprep.subr.mxu0 0.0
    %904 = vmatpush1.xpose.msra.mxu0 0.0
    %905 = vmatprep.subr.mxu0 0.0
    %906 = vmatpush1.xpose.msra.mxu0 0.0
    %907 = vmatprep.subr.mxu0 0.0
    %908 = vmatpush1.xpose.msra.mxu0 0.0
    %909 = vmatprep.subr.mxu0 0.0
    %910 = vmatpush1.xpose.msra.mxu0 0.0
    %911 = vmatprep.subr.mxu0 0.0
    %912 = vmatpush1.xpose.msra.mxu0 0.0
    %913 = vmatprep.subr.mxu0 0.0
    %914 = vmatpush1.xpose.msra.mxu0 0.0
    %915 = vmatprep.subr.mxu0 0.0
    %916 = vmatpush1.xpose.msra.mxu0 0.0
    %917 = vmatprep.subr.mxu0 0.0
    %918 = vmatpush1.xpose.msra.mxu0 0.0
    %919 = vmatprep.subr.mxu0 0.0
    %920 = vmatpush1.xpose.msra.mxu0 0.0
    %921 = vmatprep.subr.mxu0 0.0
    %922 = vmatpush1.xpose.msra.mxu0 0.0
    %923 = vmatprep.subr.mxu0 0.0
    %924 = vmatpush1.xpose.msra.mxu0 0.0
    %925 = vmatprep.subr.mxu0 0.0
    %926 = vmatpush1.xpose.msra.mxu0 0.0
    %927 = vmatprep.subr.mxu0 0.0
    %928 = vmatpush1.xpose.msra.mxu0 0.0
    %929 = vmatprep.subr.mxu0 0.0
    %930 = vmatpush1.xpose.msra.mxu0 0.0
    %931 = vmatprep.mubr.f32.mxu0 0.0
    %932 = vmatmul.mubr.f32.gmra.mrb[0].mxu0 %v863
    %v933 = vpop.f32.mrb[0].mxu0
    %v934 = vadd.f32 0.0, %v933
    %v935 = vpop.f32.mrb[0].mxu0
    %936 = vdwg.mxu0
    %v937 = vsel %vm272, -inf, %v856
    %v938 = vsel %vm272, -inf, %v934
    %v939 = vsel %vm119, %v937, -inf
    %940 = vmax.xlane.f32.xlu0 %v939
    %v941 = vpop.xlane.xlu0 %940
    %v942 = vsel %vm119, %v938, -inf
    %943 = vmax.xlane.f32.xlu0 %v942
    %v944 = vpop.xlane.xlu0 %943
    %v945 = vsub.f32 %v937, %v941
    %v946 = vsub.f32 %v938, %v944
    %v947 = vmul.f32 %v945, 1.442695
    %v948 = vpow.pop %v947
    %v949 = vmul.f32 %v946, 1.442695
    %v950 = vpow.pop %v949
    %v951 = vsel %vm119, %v948, 0.0
    %952 = vadd.xlane.f32.xlu0 %v951
    %v953 = vpop.xlane.xlu0 %952
    %v954 = vsel %vm119, %v950, 0.0
    %955 = vadd.xlane.f32.xlu0 %v954
    %v956 = vpop.xlane.xlu0 %955
    %v957 = vrcp.pop %v953
    %v958 = vrcp.pop %v956
    %v959 = vmul.f32 %v948, %v957
    %v960 = vmul.f32 %v950, %v958
    %961 = vrot.lane.b32.xlu0 %v103, 48
    %v962 = vpop.permute.xlu0 %961
    %v965 = vsel %vm119, %v959, 0
    %967 = vmatprep.subr.mxu0 0.0
    %968 = vmatpush1.msra.mxu0 %v962
    %969 = vmatprep.subr.mxu0 0.0
    %970 = vmatpush1.msra.mxu0 0.0
    %971 = vmatprep.subr.mxu0 0.0
    %972 = vmatpush1.msra.mxu0 0.0
    %973 = vmatprep.subr.mxu0 0.0
    %974 = vmatpush1.msra.mxu0 0.0
    %975 = vmatprep.subr.mxu0 0.0
    %976 = vmatpush1.msra.mxu0 0.0
    %977 = vmatprep.subr.mxu0 0.0
    %978 = vmatpush1.msra.mxu0 0.0
    %979 = vmatprep.subr.mxu0 0.0
    %980 = vmatpush1.msra.mxu0 0.0
    %981 = vmatprep.subr.mxu0 0.0
    %982 = vmatpush1.msra.mxu0 0.0
    %983 = vmatprep.subr.mxu0 0.0
    %984 = vmatpush1.msra.mxu0 0.0
    %985 = vmatprep.subr.mxu0 0.0
    %986 = vmatpush1.msra.mxu0 0.0
    %987 = vmatprep.subr.mxu0 0.0
    %988 = vmatpush1.msra.mxu0 0.0
    %989 = vmatprep.subr.mxu0 0.0
    %990 = vmatpush1.msra.mxu0 0.0
    %991 = vmatprep.subr.mxu0 0.0
    %992 = vmatpush1.msra.mxu0 0.0
    %993 = vmatprep.subr.mxu0 0.0
    %994 = vmatpush1.msra.mxu0 0.0
    %995 = vmatprep.subr.mxu0 0.0
    %996 = vmatpush1.msra.mxu0 0.0
    %997 = vmatprep.subr.mxu0 0.0
    %998 = vmatpush1.msra.mxu0 0.0
    %999 = vmatprep.subr.mxu0 0.0
    %1000 = vmatpush1.msra.mxu0 0.0
    %1001 = vmatprep.subr.mxu0 0.0
    %1002 = vmatpush1.msra.mxu0 0.0
    %1003 = vmatprep.subr.mxu0 0.0
    %1004 = vmatpush1.msra.mxu0 0.0
    %1005 = vmatprep.subr.mxu0 0.0
    %1006 = vmatpush1.msra.mxu0 0.0
    %1007 = vmatprep.subr.mxu0 0.0
    %1008 = vmatpush1.msra.mxu0 0.0
    %1009 = vmatprep.subr.mxu0 0.0
    %1010 = vmatpush1.msra.mxu0 0.0
    %1011 = vmatprep.subr.mxu0 0.0
    %1012 = vmatpush1.msra.mxu0 0.0
    %1013 = vmatprep.subr.mxu0 0.0
    %1014 = vmatpush1.msra.mxu0 0.0
    %1015 = vmatprep.subr.mxu0 0.0
    %1016 = vmatpush1.msra.mxu0 0.0
    %1017 = vmatprep.subr.mxu0 0.0
    %1018 = vmatpush1.msra.mxu0 0.0
    %1019 = vmatprep.subr.mxu0 0.0
    %1020 = vmatpush1.msra.mxu0 0.0
    %1021 = vmatprep.subr.mxu0 0.0
    %1022 = vmatpush1.msra.mxu0 0.0
    %1023 = vmatprep.subr.mxu0 0.0
    %1024 = vmatpush1.msra.mxu0 0.0
    %1025 = vmatprep.subr.mxu0 0.0
    %1026 = vmatpush1.msra.mxu0 0.0
    %1027 = vmatprep.subr.mxu0 0.0
    %1028 = vmatpush1.msra.mxu0 0.0
    %1029 = vmatprep.subr.mxu0 0.0
    %1030 = vmatpush1.msra.mxu0 0.0
    %1031 = vmatprep.mubr.f32.mxu0 0.0
    %1032 = vmatmul.mubr.f32.gmra.mrb[0].mxu0 %v965
    %v1033 = vpop.f32.mrb[0].mxu0
    %v1034 = vadd.f32 0.0, %v1033
    %v1035 = vpop.f32.mrb[0].mxu0
    %1036 = vdwg.mxu0
    %1037 = vrot.lane.b32.xlu0 %v108, 48
    %v1038 = vpop.permute.xlu0 %1037
    %v1041 = vsel %vm119, %v960, 0
    %1043 = vmatprep.subr.mxu0 0.0
    %1044 = vmatpush1.msra.mxu0 %v1038
    %1045 = vmatprep.subr.mxu0 0.0
    %1046 = vmatpush1.msra.mxu0 0.0
    %1047 = vmatprep.subr.mxu0 0.0
    %1048 = vmatpush1.msra.mxu0 0.0
    %1049 = vmatprep.subr.mxu0 0.0
    %1050 = vmatpush1.msra.mxu0 0.0
    %1051 = vmatprep.subr.mxu0 0.0
    %1052 = vmatpush1.msra.mxu0 0.0
    %1053 = vmatprep.subr.mxu0 0.0
    %1054 = vmatpush1.msra.mxu0 0.0
    %1055 = vmatprep.subr.mxu0 0.0
    %1056 = vmatpush1.msra.mxu0 0.0
    %1057 = vmatprep.subr.mxu0 0.0
    %1058 = vmatpush1.msra.mxu0 0.0
    %1059 = vmatprep.subr.mxu0 0.0
    %1060 = vmatpush1.msra.mxu0 0.0
    %1061 = vmatprep.subr.mxu0 0.0
    %1062 = vmatpush1.msra.mxu0 0.0
    %1063 = vmatprep.subr.mxu0 0.0
    %1064 = vmatpush1.msra.mxu0 0.0
    %1065 = vmatprep.subr.mxu0 0.0
    %1066 = vmatpush1.msra.mxu0 0.0
    %1067 = vmatprep.subr.mxu0 0.0
    %1068 = vmatpush1.msra.mxu0 0.0
    %1069 = vmatprep.subr.mxu0 0.0
    %1070 = vmatpush1.msra.mxu0 0.0
    %1071 = vmatprep.subr.mxu0 0.0
    %1072 = vmatpush1.msra.mxu0 0.0
    %1073 = vmatprep.subr.mxu0 0.0
    %1074 = vmatpush1.msra.mxu0 0.0
    %1075 = vmatprep.subr.mxu0 0.0
    %1076 = vmatpush1.msra.mxu0 0.0
    %1077 = vmatprep.subr.mxu0 0.0
    %1078 = vmatpush1.msra.mxu0 0.0
    %1079 = vmatprep.subr.mxu0 0.0
    %1080 = vmatpush1.msra.mxu0 0.0
    %1081 = vmatprep.subr.mxu0 0.0
    %1082 = vmatpush1.msra.mxu0 0.0
    %1083 = vmatprep.subr.mxu0 0.0
    %1084 = vmatpush1.msra.mxu0 0.0
    %1085 = vmatprep.subr.mxu0 0.0
    %1086 = vmatpush1.msra.mxu0 0.0
    %1087 = vmatprep.subr.mxu0 0.0
    %1088 = vmatpush1.msra.mxu0 0.0
    %1089 = vmatprep.subr.mxu0 0.0
    %1090 = vmatpush1.msra.mxu0 0.0
    %1091 = vmatprep.subr.mxu0 0.0
    %1092 = vmatpush1.msra.mxu0 0.0
    %1093 = vmatprep.subr.mxu0 0.0
    %1094 = vmatpush1.msra.mxu0 0.0
    %1095 = vmatprep.subr.mxu0 0.0
    %1096 = vmatpush1.msra.mxu0 0.0
    %1097 = vmatprep.subr.mxu0 0.0
    %1098 = vmatpush1.msra.mxu0 0.0
    %1099 = vmatprep.subr.mxu0 0.0
    %1100 = vmatpush1.msra.mxu0 0.0
    %1101 = vmatprep.subr.mxu0 0.0
    %1102 = vmatpush1.msra.mxu0 0.0
    %1103 = vmatprep.subr.mxu0 0.0
    %1104 = vmatpush1.msra.mxu0 0.0
    %1105 = vmatprep.subr.mxu0 0.0
    %1106 = vmatpush1.msra.mxu0 0.0
    %1107 = vmatprep.mubr.f32.mxu0 0.0
    %1108 = vmatmul.mubr.f32.gmra.mrb[0].mxu0 %v1041
    %v1109 = vpop.f32.mrb[0].mxu0
    %v1110 = vadd.f32 0.0, %v1109
    %v1111 = vpop.f32.mrb[0].mxu0
    %1112 = vdwg.mxu0
    %1113 = vrot.lane.b32.xlu0 %v103, 104
    %v1114 = vpop.permute.xlu0 %1113
    %1115 = vrot.lane.b32.xlu0 %v103, 72
    %v1116 = vpop.permute.xlu0 %1115
    %v1117 = vsel %vm119, %v1114, 0
    %v1119 = vsel %vm119, %v1116, 0
    %1121 = vmatprep.subr.mxu0 0.0
    %1122 = vmatpush1.xpose.msra.mxu0 %v1119
    %1123 = vmatprep.subr.mxu0 0.0
    %1124 = vmatpush1.xpose.msra.mxu0 0.0
    %1125 = vmatprep.subr.mxu0 0.0
    %1126 = vmatpush1.xpose.msra.mxu0 0.0
    %1127 = vmatprep.subr.mxu0 0.0
    %1128 = vmatpush1.xpose.msra.mxu0 0.0
    %1129 = vmatprep.subr.mxu0 0.0
    %1130 = vmatpush1.xpose.msra.mxu0 0.0
    %1131 = vmatprep.subr.mxu0 0.0
    %1132 = vmatpush1.xpose.msra.mxu0 0.0
    %1133 = vmatprep.subr.mxu0 0.0
    %1134 = vmatpush1.xpose.msra.mxu0 0.0
    %1135 = vmatprep.subr.mxu0 0.0
    %1136 = vmatpush1.xpose.msra.mxu0 0.0
    %1137 = vmatprep.subr.mxu0 0.0
    %1138 = vmatpush1.xpose.msra.mxu0 0.0
    %1139 = vmatprep.subr.mxu0 0.0
    %1140 = vmatpush1.xpose.msra.mxu0 0.0
    %1141 = vmatprep.subr.mxu0 0.0
    %1142 = vmatpush1.xpose.msra.mxu0 0.0
    %1143 = vmatprep.subr.mxu0 0.0
    %1144 = vmatpush1.xpose.msra.mxu0 0.0
    %1145 = vmatprep.subr.mxu0 0.0
    %1146 = vmatpush1.xpose.msra.mxu0 0.0
    %1147 = vmatprep.subr.mxu0 0.0
    %1148 = vmatpush1.xpose.msra.mxu0 0.0
    %1149 = vmatprep.subr.mxu0 0.0
    %1150 = vmatpush1.xpose.msra.mxu0 0.0
    %1151 = vmatprep.subr.mxu0 0.0
    %1152 = vmatpush1.xpose.msra.mxu0 0.0
    %1153 = vmatprep.subr.mxu0 0.0
    %1154 = vmatpush1.xpose.msra.mxu0 0.0
    %1155 = vmatprep.subr.mxu0 0.0
    %1156 = vmatpush1.xpose.msra.mxu0 0.0
    %1157 = vmatprep.subr.mxu0 0.0
    %1158 = vmatpush1.xpose.msra.mxu0 0.0
    %1159 = vmatprep.subr.mxu0 0.0
    %1160 = vmatpush1.xpose.msra.mxu0 0.0
    %1161 = vmatprep.subr.mxu0 0.0
    %1162 = vmatpush1.xpose.msra.mxu0 0.0
    %1163 = vmatprep.subr.mxu0 0.0
    %1164 = vmatpush1.xpose.msra.mxu0 0.0
    %1165 = vmatprep.subr.mxu0 0.0
    %1166 = vmatpush1.xpose.msra.mxu0 0.0
    %1167 = vmatprep.subr.mxu0 0.0
    %1168 = vmatpush1.xpose.msra.mxu0 0.0
    %1169 = vmatprep.subr.mxu0 0.0
    %1170 = vmatpush1.xpose.msra.mxu0 0.0
    %1171 = vmatprep.subr.mxu0 0.0
    %1172 = vmatpush1.xpose.msra.mxu0 0.0
    %1173 = vmatprep.subr.mxu0 0.0
    %1174 = vmatpush1.xpose.msra.mxu0 0.0
    %1175 = vmatprep.subr.mxu0 0.0
    %1176 = vmatpush1.xpose.msra.mxu0 0.0
    %1177 = vmatprep.subr.mxu0 0.0
    %1178 = vmatpush1.xpose.msra.mxu0 0.0
    %1179 = vmatprep.subr.mxu0 0.0
    %1180 = vmatpush1.xpose.msra.mxu0 0.0
    %1181 = vmatprep.subr.mxu0 0.0
    %1182 = vmatpush1.xpose.msra.mxu0 0.0
    %1183 = vmatprep.subr.mxu0 0.0
    %1184 = vmatpush1.xpose.msra.mxu0 0.0
    %1185 = vmatprep.mubr.f32.mxu0 0.0
    %1186 = vmatmul.mubr.f32.gmra.mrb[0].mxu0 %v1117
    %v1187 = vpop.f32.mrb[0].mxu0
    %v1188 = vadd.f32 0.0, %v1187
    %v1189 = vpop.f32.mrb[0].mxu0
    %1190 = vdwg.mxu0
    %1191 = vrot.lane.b32.xlu0 %v108, 104
    %v1192 = vpop.permute.xlu0 %1191
    %1193 = vrot.lane.b32.xlu0 %v108, 72
    %v1194 = vpop.permute.xlu0 %1193
    %v1195 = vsel %vm119, %v1192, 0
    %v1197 = vsel %vm119, %v1194, 0
    %1199 = vmatprep.subr.mxu0 0.0
    %1200 = vmatpush1.xpose.msra.mxu0 %v1197
    %1201 = vmatprep.subr.mxu0 0.0
    %1202 = vmatpush1.xpose.msra.mxu0 0.0
    %1203 = vmatprep.subr.mxu0 0.0
    %1204 = vmatpush1.xpose.msra.mxu0 0.0
    %1205 = vmatprep.subr.mxu0 0.0
    %1206 = vmatpush1.xpose.msra.mxu0 0.0
    %1207 = vmatprep.subr.mxu0 0.0
    %1208 = vmatpush1.xpose.msra.mxu0 0.0
    %1209 = vmatprep.subr.mxu0 0.0
    %1210 = vmatpush1.xpose.msra.mxu0 0.0
    %1211 = vmatprep.subr.mxu0 0.0
    %1212 = vmatpush1.xpose.msra.mxu0 0.0
    %1213 = vmatprep.subr.mxu0 0.0
    %1214 = vmatpush1.xpose.msra.mxu0 0.0
    %1215 = vmatprep.subr.mxu0 0.0
    %1216 = vmatpush1.xpose.msra.mxu0 0.0
    %1217 = vmatprep.subr.mxu0 0.0
    %1218 = vmatpush1.xpose.msra.mxu0 0.0
    %1219 = vmatprep.subr.mxu0 0.0
    %1220 = vmatpush1.xpose.msra.mxu0 0.0
    %1221 = vmatprep.subr.mxu0 0.0
    %1222 = vmatpush1.xpose.msra.mxu0 0.0
    %1223 = vmatprep.subr.mxu0 0.0
    %1224 = vmatpush1.xpose.msra.mxu0 0.0
    %1225 = vmatprep.subr.mxu0 0.0
    %1226 = vmatpush1.xpose.msra.mxu0 0.0
    %1227 = vmatprep.subr.mxu0 0.0
    %1228 = vmatpush1.xpose.msra.mxu0 0.0
    %1229 = vmatprep.subr.mxu0 0.0
    %1230 = vmatpush1.xpose.msra.mxu0 0.0
    %1231 = vmatprep.subr.mxu0 0.0
    %1232 = vmatpush1.xpose.msra.mxu0 0.0
    %1233 = vmatprep.subr.mxu0 0.0
    %1234 = vmatpush1.xpose.msra.mxu0 0.0
    %1235 = vmatprep.subr.mxu0 0.0
    %1236 = vmatpush1.xpose.msra.mxu0 0.0
    %1237 = vmatprep.subr.mxu0 0.0
    %1238 = vmatpush1.xpose.msra.mxu0 0.0
    %1239 = vmatprep.subr.mxu0 0.0
    %1240 = vmatpush1.xpose.msra.mxu0 0.0
    %1241 = vmatprep.subr.mxu0 0.0
    %1242 = vmatpush1.xpose.msra.mxu0 0.0
    %1243 = vmatprep.subr.mxu0 0.0
    %1244 = vmatpush1.xpose.msra.mxu0 0.0
    %1245 = vmatprep.subr.mxu0 0.0
    %1246 = vmatpush1.xpose.msra.mxu0 0.0
    %1247 = vmatprep.subr.mxu0 0.0
    %1248 = vmatpush1.xpose.msra.mxu0 0.0
    %1249 = vmatprep.subr.mxu0 0.0
    %1250 = vmatpush1.xpose.msra.mxu0 0.0
    %1251 = vmatprep.subr.mxu0 0.0
    %1252 = vmatpush1.xpose.msra.mxu0 0.0
    %1253 = vmatprep.subr.mxu0 0.0
    %1254 = vmatpush1.xpose.msra.mxu0 0.0
    %1255 = vmatprep.subr.mxu0 0.0
    %1256 = vmatpush1.xpose.msra.mxu0 0.0
    %1257 = vmatprep.subr.mxu0 0.0
    %1258 = vmatpush1.xpose.msra.mxu0 0.0
    %1259 = vmatprep.subr.mxu0 0.0
    %1260 = vmatpush1.xpose.msra.mxu0 0.0
    %1261 = vmatprep.subr.mxu0 0.0
    %1262 = vmatpush1.xpose.msra.mxu0 0.0
    %1263 = vmatprep.mubr.f32.mxu0 0.0
    %1264 = vmatmul.mubr.f32.gmra.mrb[0].mxu0 %v1195
    %v1265 = vpop.f32.mrb[0].mxu0
    %v1266 = vadd.f32 0.0, %v1265
    %v1267 = vpop.f32.mrb[0].mxu0
    %1268 = vdwg.mxu0
    %v1269 = vsel %vm272, -inf, %v1188
    %v1270 = vsel %vm272, -inf, %v1266
    %v1271 = vsel %vm119, %v1269, -inf
    %1272 = vmax.xlane.f32.xlu0 %v1271
    %v1273 = vpop.xlane.xlu0 %1272
    %v1274 = vsel %vm119, %v1270, -inf
    %1275 = vmax.xlane.f32.xlu0 %v1274
    %v1276 = vpop.xlane.xlu0 %1275
    %v1277 = vsub.f32 %v1269, %v1273
    %v1278 = vsub.f32 %v1270, %v1276
    %v1279 = vmul.f32 %v1277, 1.442695
    %v1280 = vpow.pop %v1279
    %v1281 = vmul.f32 %v1278, 1.442695
    %v1282 = vpow.pop %v1281
    %v1283 = vsel %vm119, %v1280, 0.0
    %1284 = vadd.xlane.f32.xlu0 %v1283
    %v1285 = vpop.xlane.xlu0 %1284
    %v1286 = vsel %vm119, %v1282, 0.0
    %1287 = vadd.xlane.f32.xlu0 %v1286
    %v1288 = vpop.xlane.xlu0 %1287
    %v1289 = vrcp.pop %v1285
    %v1290 = vrcp.pop %v1288
    %v1291 = vmul.f32 %v1280, %v1289
    %v1292 = vmul.f32 %v1282, %v1290
    %1293 = vrot.lane.b32.xlu0 %v103, 40
    %v1294 = vpop.permute.xlu0 %1293
    %v1297 = vsel %vm119, %v1291, 0
    %1299 = vmatprep.subr.mxu0 0.0
    %1300 = vmatpush1.msra.mxu0 %v1294
    %1301 = vmatprep.subr.mxu0 0.0
    %1302 = vmatpush1.msra.mxu0 0.0
    %1303 = vmatprep.subr.mxu0 0.0
    %1304 = vmatpush1.msra.mxu0 0.0
    %1305 = vmatprep.subr.mxu0 0.0
    %1306 = vmatpush1.msra.mxu0 0.0
    %1307 = vmatprep.subr.mxu0 0.0
    %1308 = vmatpush1.msra.mxu0 0.0
    %1309 = vmatprep.subr.mxu0 0.0
    %1310 = vmatpush1.msra.mxu0 0.0
    %1311 = vmatprep.subr.mxu0 0.0
    %1312 = vmatpush1.msra.mxu0 0.0
    %1313 = vmatprep.subr.mxu0 0.0
    %1314 = vmatpush1.msra.mxu0 0.0
    %1315 = vmatprep.subr.mxu0 0.0
    %1316 = vmatpush1.msra.mxu0 0.0
    %1317 = vmatprep.subr.mxu0 0.0
    %1318 = vmatpush1.msra.mxu0 0.0
    %1319 = vmatprep.subr.mxu0 0.0
    %1320 = vmatpush1.msra.mxu0 0.0
    %1321 = vmatprep.subr.mxu0 0.0
    %1322 = vmatpush1.msra.mxu0 0.0
    %1323 = vmatprep.subr.mxu0 0.0
    %1324 = vmatpush1.msra.mxu0 0.0
    %1325 = vmatprep.subr.mxu0 0.0
    %1326 = vmatpush1.msra.mxu0 0.0
    %1327 = vmatprep.subr.mxu0 0.0
    %1328 = vmatpush1.msra.mxu0 0.0
    %1329 = vmatprep.subr.mxu0 0.0
    %1330 = vmatpush1.msra.mxu0 0.0
    %1331 = vmatprep.subr.mxu0 0.0
    %1332 = vmatpush1.msra.mxu0 0.0
    %1333 = vmatprep.subr.mxu0 0.0
    %1334 = vmatpush1.msra.mxu0 0.0
    %1335 = vmatprep.subr.mxu0 0.0
    %1336 = vmatpush1.msra.mxu0 0.0
    %1337 = vmatprep.subr.mxu0 0.0
    %1338 = vmatpush1.msra.mxu0 0.0
    %1339 = vmatprep.subr.mxu0 0.0
    %1340 = vmatpush1.msra.mxu0 0.0
    %1341 = vmatprep.subr.mxu0 0.0
    %1342 = vmatpush1.msra.mxu0 0.0
    %1343 = vmatprep.subr.mxu0 0.0
    %1344 = vmatpush1.msra.mxu0 0.0
    %1345 = vmatprep.subr.mxu0 0.0
    %1346 = vmatpush1.msra.mxu0 0.0
    %1347 = vmatprep.subr.mxu0 0.0
    %1348 = vmatpush1.msra.mxu0 0.0
    %1349 = vmatprep.subr.mxu0 0.0
    %1350 = vmatpush1.msra.mxu0 0.0
    %1351 = vmatprep.subr.mxu0 0.0
    %1352 = vmatpush1.msra.mxu0 0.0
    %1353 = vmatprep.subr.mxu0 0.0
    %1354 = vmatpush1.msra.mxu0 0.0
    %1355 = vmatprep.subr.mxu0 0.0
    %1356 = vmatpush1.msra.mxu0 0.0
    %1357 = vmatprep.subr.mxu0 0.0
    %1358 = vmatpush1.msra.mxu0 0.0
    %1359 = vmatprep.subr.mxu0 0.0
    %1360 = vmatpush1.msra.mxu0 0.0
    %1361 = vmatprep.subr.mxu0 0.0
    %1362 = vmatpush1.msra.mxu0 0.0
    %1363 = vmatprep.mubr.f32.mxu0 0.0
    %1364 = vmatmul.mubr.f32.gmra.mrb[0].mxu0 %v1297
    %v1365 = vpop.f32.mrb[0].mxu0
    %v1366 = vadd.f32 0.0, %v1365
    %v1367 = vpop.f32.mrb[0].mxu0
    %1368 = vdwg.mxu0
    %1369 = vrot.lane.b32.xlu0 %v108, 40
    %v1370 = vpop.permute.xlu0 %1369
    %v1373 = vsel %vm119, %v1292, 0
    %1375 = vmatprep.subr.mxu0 0.0
    %1376 = vmatpush1.msra.mxu0 %v1370
    %1377 = vmatprep.subr.mxu0 0.0
    %1378 = vmatpush1.msra.mxu0 0.0
    %1379 = vmatprep.subr.mxu0 0.0
    %1380 = vmatpush1.msra.mxu0 0.0
    %1381 = vmatprep.subr.mxu0 0.0
    %1382 = vmatpush1.msra.mxu0 0.0
    %1383 = vmatprep.subr.mxu0 0.0
    %1384 = vmatpush1.msra.mxu0 0.0
    %1385 = vmatprep.subr.mxu0 0.0
    %1386 = vmatpush1.msra.mxu0 0.0
    %1387 = vmatprep.subr.mxu0 0.0
    %1388 = vmatpush1.msra.mxu0 0.0
    %1389 = vmatprep.subr.mxu0 0.0
    %1390 = vmatpush1.msra.mxu0 0.0
    %1391 = vmatprep.subr.mxu0 0.0
    %1392 = vmatpush1.msra.mxu0 0.0
    %1393 = vmatprep.subr.mxu0 0.0
    %1394 = vmatpush1.msra.mxu0 0.0
    %1395 = vmatprep.subr.mxu0 0.0
    %1396 = vmatpush1.msra.mxu0 0.0
    %1397 = vmatprep.subr.mxu0 0.0
    %1398 = vmatpush1.msra.mxu0 0.0
    %1399 = vmatprep.subr.mxu0 0.0
    %1400 = vmatpush1.msra.mxu0 0.0
    %1401 = vmatprep.subr.mxu0 0.0
    %1402 = vmatpush1.msra.mxu0 0.0
    %1403 = vmatprep.subr.mxu0 0.0
    %1404 = vmatpush1.msra.mxu0 0.0
    %1405 = vmatprep.subr.mxu0 0.0
    %1406 = vmatpush1.msra.mxu0 0.0
    %1407 = vmatprep.subr.mxu0 0.0
    %1408 = vmatpush1.msra.mxu0 0.0
    %1409 = vmatprep.subr.mxu0 0.0
    %1410 = vmatpush1.msra.mxu0 0.0
    %1411 = vmatprep.subr.mxu0 0.0
    %1412 = vmatpush1.msra.mxu0 0.0
    %1413 = vmatprep.subr.mxu0 0.0
    %1414 = vmatpush1.msra.mxu0 0.0
    %1415 = vmatprep.subr.mxu0 0.0
    %1416 = vmatpush1.msra.mxu0 0.0
    %1417 = vmatprep.subr.mxu0 0.0
    %1418 = vmatpush1.msra.mxu0 0.0
    %1419 = vmatprep.subr.mxu0 0.0
    %1420 = vmatpush1.msra.mxu0 0.0
    %1421 = vmatprep.subr.mxu0 0.0
    %1422 = vmatpush1.msra.mxu0 0.0
    %1423 = vmatprep.subr.mxu0 0.0
    %1424 = vmatpush1.msra.mxu0 0.0
    %1425 = vmatprep.subr.mxu0 0.0
    %1426 = vmatpush1.msra.mxu0 0.0
    %1427 = vmatprep.subr.mxu0 0.0
    %1428 = vmatpush1.msra.mxu0 0.0
    %1429 = vmatprep.subr.mxu0 0.0
    %1430 = vmatpush1.msra.mxu0 0.0
    %1431 = vmatprep.subr.mxu0 0.0
    %1432 = vmatpush1.msra.mxu0 0.0
    %1433 = vmatprep.subr.mxu0 0.0
    %1434 = vmatpush1.msra.mxu0 0.0
    %1435 = vmatprep.subr.mxu0 0.0
    %1436 = vmatpush1.msra.mxu0 0.0
    %1437 = vmatprep.subr.mxu0 0.0
    %1438 = vmatpush1.msra.mxu0 0.0
    %1439 = vmatprep.mubr.f32.mxu0 0.0
    %1440 = vmatmul.mubr.f32.gmra.mrb[0].mxu0 %v1373
    %v1441 = vpop.f32.mrb[0].mxu0
    %v1442 = vadd.f32 0.0, %v1441
    %v1443 = vpop.f32.mrb[0].mxu0
    %1444 = vdwg.mxu0
    %1447 = vrot.lane.b32.xlu0 %v702, 8
    %v1448 = vpop.permute.xlu0 %1447
    %1449 = vrot.lane.b32.xlu0 %v778, 8
    %v1450 = vpop.permute.xlu0 %1449
    %1455 = vrot.lane.b32.xlu0 %v1034, 16
    %v1456 = vpop.permute.xlu0 %1455
    %1457 = vrot.lane.b32.xlu0 %v1110, 16
    %v1458 = vpop.permute.xlu0 %1457
    %1463 = vrot.lane.b32.xlu0 %v1366, 24
    %v1464 = vpop.permute.xlu0 %1463
    %1465 = vrot.lane.b32.xlu0 %v1442, 24
    %v1466 = vpop.permute.xlu0 %1465
    %v1469 = vsel %vm119, %v370, %v1448
    %v1470 = vsel %vm119, %v446, %v1450
    %vm1471 = vcmask 130048
    %v1472 = vsel %vm1471, %v1469, %v1456
    %v1473 = vsel %vm1471, %v1470, %v1458
    %vm1474 = vcmask 195584
    %v1475 = vsel %vm1474, %v1472, %v1464
    %v1476 = vsel %vm1474, %v1473, %v1466
    %v1477 = vld [vmem:[%s2] sm:$0xff]
    %v1478 = vld [vmem:[%s2 + $0x8] sm:$0xff]
    %v1479 = vld [vmem:[%s2 + $0x10] sm:$0xff]
    %v1480 = vld [vmem:[%s2 + $0x18] sm:$0xff]
    %v1481 = vld [vmem:[%s3] sm:$0x1]
    %v1483 = vlaneseq
    %v1484 = vshrl.u32 %v1483, 7
    %v1485 = vsub.s32 0, %v1484
    %v1486 = vrot.slane %v1481, %v1485
    %vm1488 = vcmask 261120
    %v1490 = vsel %vm1488, %v1475, 0
    %v1493 = vsel %vm1488, %v1476, 0
    %1495 = vmatprep.subr.mxu0 0.0
    %1496 = vmatpush1.msra.mxu0 %v1477
    %1497 = vmatprep.subr.mxu0 0.0
    %1498 = vmatpush1.msra.mxu0 %v1478
    %1499 = vmatprep.subr.mxu0 0.0
    %1500 = vmatpush1.msra.mxu0 %v1479
    %1501 = vmatprep.subr.mxu0 0.0
    %1502 = vmatpush1.msra.mxu0 %v1480
    %1503 = vmatprep.subr.mxu0 0.0
    %1504 = vmatpush1.msra.mxu0 0.0
    %1505 = vmatprep.subr.mxu0 0.0
    %1506 = vmatpush1.msra.mxu0 0.0
    %1507 = vmatprep.subr.mxu0 0.0
    %1508 = vmatpush1.msra.mxu0 0.0
    %1509 = vmatprep.subr.mxu0 0.0
    %1510 = vmatpush1.msra.mxu0 0.0
    %1511 = vmatprep.subr.mxu0 0.0
    %1512 = vmatpush1.msra.mxu0 0.0
    %1513 = vmatprep.subr.mxu0 0.0
    %1514 = vmatpush1.msra.mxu0 0.0
    %1515 = vmatprep.subr.mxu0 0.0
    %1516 = vmatpush1.msra.mxu0 0.0
    %1517 = vmatprep.subr.mxu0 0.0
    %1518 = vmatpush1.msra.mxu0 0.0
    %1519 = vmatprep.subr.mxu0 0.0
    %1520 = vmatpush1.msra.mxu0 0.0
    %1521 = vmatprep.subr.mxu0 0.0
    %1522 = vmatpush1.msra.mxu0 0.0
    %1523 = vmatprep.subr.mxu0 0.0
    %1524 = vmatpush1.msra.mxu0 0.0
    %1525 = vmatprep.subr.mxu0 0.0
    %1526 = vmatpush1.msra.mxu0 0.0
    %1527 = vmatprep.subr.mxu0 0.0
    %1528 = vmatpush1.msra.mxu0 0.0
    %1529 = vmatprep.subr.mxu0 0.0
    %1530 = vmatpush1.msra.mxu0 0.0
    %1531 = vmatprep.subr.mxu0 0.0
    %1532 = vmatpush1.msra.mxu0 0.0
    %1533 = vmatprep.subr.mxu0 0.0
    %1534 = vmatpush1.msra.mxu0 0.0
    %1535 = vmatprep.subr.mxu0 0.0
    %1536 = vmatpush1.msra.mxu0 0.0
    %1537 = vmatprep.subr.mxu0 0.0
    %1538 = vmatpush1.msra.mxu0 0.0
    %1539 = vmatprep.subr.mxu0 0.0
    %1540 = vmatpush1.msra.mxu0 0.0
    %1541 = vmatprep.subr.mxu0 0.0
    %1542 = vmatpush1.msra.mxu0 0.0
    %1543 = vmatprep.subr.mxu0 0.0
    %1544 = vmatpush1.msra.mxu0 0.0
    %1545 = vmatprep.subr.mxu0 0.0
    %1546 = vmatpush1.msra.mxu0 0.0
    %1547 = vmatprep.subr.mxu0 0.0
    %1548 = vmatpush1.msra.mxu0 0.0
    %1549 = vmatprep.subr.mxu0 0.0
    %1550 = vmatpush1.msra.mxu0 0.0
    %1551 = vmatprep.subr.mxu0 0.0
    %1552 = vmatpush1.msra.mxu0 0.0
    %1553 = vmatprep.subr.mxu0 0.0
    %1554 = vmatpush1.msra.mxu0 0.0
    %1555 = vmatprep.subr.mxu0 0.0
    %1556 = vmatpush1.msra.mxu0 0.0
    %1557 = vmatprep.subr.mxu0 0.0
    %1558 = vmatpush1.msra.mxu0 0.0
    %1559 = vmatprep.mubr.f32.mxu0 0.0
    %1560 = vmatmul.mubr.f32.gmra.mrb[0].mxu0 %v1490
    %v1561 = vpop.f32.mrb[0].mxu0
    %v1562 = vadd.f32 %v1486, %v1561
    %v1563 = vpop.f32.mrb[0].mxu0
    %1564 = vmatprep.mubr.f32.mxu0 0.0
    %1565 = vmatmul.mubr.f32.gmra.mrb[0].mxu0 %v1493
    %v1566 = vpop.f32.mrb[0].mxu0
    %v1567 = vadd.f32 %v1486, %v1566
    %v1568 = vpop.f32.mrb[0].mxu0
    %1569 = vdwg.mxu0
    %1570 = vst [vmem:[#allocation2] sm:$0xff] %v1562
    %1571 = vst [vmem:[#allocation2 + $0x8] sm:$0xff] %v1567
    // Predicated region
    $region18: #{mia_multi_head_attention.1} parent=1 // pred_check
      _
    $region19: #{mia_multi_head_attention.1} parent=1 // pred_check_branch
      %1573 = sbr.rel (0) target = $region21
    $region20: #{mia_multi_head_attention.1} parent=1 // pred_region
      %s1575 = ssub.s32 256, 256
      %1576 = vsyncadd [#allocation3], %s1575
      %s1577 = sshll.u32 [#allocation2], 4
      %s1578 = int_to_ptr.vmem [resolvable:$true] %s1577
      %1583 = dma.vmem_to_hbm [thread:$0]  %s1578, 256, %s4, [#allocation3], 128, 128, 8
    $region21: #{mia_multi_head_attention.1} parent=1 // pred_fallthru
      _
    // Predicated region
    $region22: #{mia_multi_head_attention.1} parent=1 // pred_check
      _
    $region23: #{mia_multi_head_attention.1} parent=1 // pred_check_branch
      %1585 = sbr.rel (0) target = $region25
    $region24: #{mia_multi_head_attention.1} parent=1 // pred_region
      %1586 = dma.done [#allocation3], 256
    $region25: #{mia_multi_head_attention.1} parent=1 // pred_fallthru
      _
    %1587 = vsyncpa [#allocation3], 1

</llo_original>
